<compile_context>
chip_gen: v7x
topology: tpu7x:2x2x1
jax: 0.10.0
libtpu: 0.0.40
codegen_flags: <defaults>
</compile_context>

<pallas_src>
import functools

import jax
import jax.numpy as jnp
from jax.experimental import pallas as pl
from jax.experimental.pallas import tpu as pltpu


def _attention_block_kernel(x_ref, scale_ref, shift_ref, w1_ref, b1_ref,
                            w2_ref, b2_ref, o_ref, *, inv_hw):
    """bN batch rows per step, data laid out [bN, C, HW_pad] (lane = HW)."""
    xf = x_ref[...].astype(jnp.float32)              # (bN, C, HWp)

    # --- Squeeze: pool raw x over lanes; BN affine folded into the pooled
    #     mean (zero padding contributes nothing, inv_hw uses the true HW).
    m = jnp.sum(xf, axis=-1) * inv_hw                # (bN, C)
    s = m * scale_ref[...] + shift_ref[...]          # mean of BN(x), (bN, C)

    # --- Excite: tiny SE MLP on the VPU in f32 (no MXU drain latency on the
    #     serial pool -> gate -> apply chain).
    r = jnp.sum(s[:, None, :] * w1_ref[...][None, :, :], axis=-1) + b1_ref[...]
    r = jnp.maximum(r, 0.0)                          # (bN, Crd)
    z = jnp.sum(r[:, None, :] * w2_ref[...][None, :, :], axis=-1) + b2_ref[...]
    g = jax.nn.sigmoid(z)                            # (bN, C), exp on EUP

    # --- Apply: out = x + BN(x)*g == x*(1 + scale*g) + shift*g, one FMA/elem.
    #     (DropPath == Identity at drop_path=0.0.)
    a = 1.0 + scale_ref[...] * g                     # (bN, C)
    b = shift_ref[...] * g                           # (bN, C)
    o_ref[...] = (xf * a[:, :, None] + b[:, :, None]).astype(o_ref.dtype)


def attention_block_forward(x_nchw, bn_gamma, bn_beta, bn_mean, bn_var,
                            w_reduce, b_reduce, w_expand, b_expand,
                            *, eps=1e-5):
    """Pallas implementation of AttentionBlock.forward (NCHW in, NCHW out)."""
    N, C, H, W = x_nchw.shape
    Crd = w_reduce.shape[0]
    HW = H * W

    # ---- Glue in plain JAX (layout preserving; NCHW -> [N, C, HW] is free) --
    x = x_nchw.reshape(N, C, HW)

    # Lane-dense spatial axis: pad HW to a multiple of 128 if needed so output
    # stores are full-lane (unmasked) vst.
    HWp = ((HW + 127) // 128) * 128
    if HWp != HW:
        x = jnp.pad(x, ((0, 0), (0, 0), (0, HWp - HW)))

    # Inference BatchNorm folded to a per-channel affine.
    scale_1d = (bn_gamma / jnp.sqrt(bn_var + eps)).astype(jnp.float32)
    shift_1d = (bn_beta - bn_mean * scale_1d).astype(jnp.float32)
    scale = scale_1d.reshape(1, C)
    shift = shift_1d.reshape(1, C)
    w1 = w_reduce.reshape(Crd, C).astype(jnp.float32)     # 1x1 conv -> matrix
    b1 = b_reduce.reshape(1, Crd).astype(jnp.float32)
    w2 = w_expand.reshape(C, Crd).astype(jnp.float32)
    b2 = b_expand.reshape(1, C).astype(jnp.float32)

    # ---- Batch the block over N: MiB-scale tiles, but keep >= 2 grid steps
    #      when N >= 2 (v7x has 2 TensorCores; "parallel" axis shards them).
    itemsize = jnp.dtype(x_nchw.dtype).itemsize
    per_n_bytes = C * HWp * itemsize
    block_budget = 4 * 1024 * 1024                          # ~4 MiB per block
    bn_max = max(1, block_budget // max(per_n_bytes, 1))
    min_steps = 2 if N >= 2 else 1
    bN = 1
    for cand in range(1, N + 1):
        if N % cand == 0 and cand <= bn_max and (N // cand) >= min_steps:
            bN = cand
    grid = (N // bN,)

    kernel = functools.partial(_attention_block_kernel, inv_hw=1.0 / HW)

    cost = pl.CostEstimate(
        flops=int(N * (3 * C * HWp + 4 * C * Crd + 4 * C)),
        transcendentals=int(N * C),
        bytes_accessed=int(2 * N * C * HWp * itemsize
                           + (4 * C + 2 * C * Crd + Crd) * 4),
    )

    out = pl.pallas_call(
        kernel,
        out_shape=jax.ShapeDtypeStruct((N, C, HWp), x_nchw.dtype),
        grid_spec=pltpu.PrefetchScalarGridSpec(
            num_scalar_prefetch=0,
            grid=grid,
            in_specs=[
                pl.BlockSpec((bN, C, HWp), lambda n: (n, 0, 0)),
                pl.BlockSpec((1, C), lambda n: (0, 0)),        # BN scale
                pl.BlockSpec((1, C), lambda n: (0, 0)),        # BN shift
                pl.BlockSpec((Crd, C), lambda n: (0, 0)),      # SE reduce W
                pl.BlockSpec((1, Crd), lambda n: (0, 0)),      # SE reduce b
                pl.BlockSpec((C, Crd), lambda n: (0, 0)),      # SE expand W
                pl.BlockSpec((1, C), lambda n: (0, 0)),        # SE expand b
            ],
            out_specs=pl.BlockSpec((bN, C, HWp), lambda n: (n, 0, 0)),
        ),
        compiler_params=pltpu.CompilerParams(
            dimension_semantics=("parallel",),
            # Blocks are capped at ~4 MiB, so 2x double-buffered in+out plus
            # params stays far below this on every generation (v7x: 64 MiB
            # physical VMEM -> keep headroom).
            vmem_limit_bytes=48 * 1024 * 1024),
        cost_estimate=cost,
    )(x, scale, shift, w1, b1, w2, b2)

    if HWp != HW:
        out = out[:, :, :HW]
    return out.reshape(N, C, H, W)


if __name__ == "__main__":
    # Module config: dim=32 (SE reduction ratio 0.25 -> 8), N=2, 16x16 spatial.
    N, C, H, W = 2, 32, 16, 16
    Crd = max(1, int(C * 0.25))
    eps = 1e-5

    key = jax.random.PRNGKey(0)
    ks = jax.random.split(key, 8)
    x = jax.random.normal(ks[0], (N, C, H, W), dtype=jnp.float32)
    bn_gamma = 1.0 + 0.1 * jax.random.normal(ks[1], (C,), dtype=jnp.float32)
    bn_beta = 0.1 * jax.random.normal(ks[2], (C,), dtype=jnp.float32)
    bn_mean = 0.1 * jax.random.normal(ks[3], (C,), dtype=jnp.float32)
    bn_var = jax.random.uniform(ks[4], (C,), dtype=jnp.float32,
                                minval=0.5, maxval=1.5)
    # SE 1x1 conv weights (same shapes as nn.Conv2d: O, I, 1, 1) + biases.
    w_reduce = 0.1 * jax.random.normal(ks[5], (Crd, C, 1, 1), dtype=jnp.float32)
    b_reduce = 0.1 * jax.random.normal(ks[6], (Crd,), dtype=jnp.float32)
    w_expand = 0.1 * jax.random.normal(ks[7], (C, Crd, 1, 1), dtype=jnp.float32)
    b_expand = jnp.zeros((C,), dtype=jnp.float32)

    out = attention_block_forward(x, bn_gamma, bn_beta, bn_mean, bn_var,
                                  w_reduce, b_reduce, w_expand, b_expand,
                                  eps=eps)
    out = jax.block_until_ready(out)

    # ---- Pure-JAX reference (inference-mode BN + timm-style SqueezeExcite) --
    scale = bn_gamma / jnp.sqrt(bn_var + eps)
    shift = bn_beta - bn_mean * scale
    y = x * scale[None, :, None, None] + shift[None, :, None, None]
    s = y.mean(axis=(2, 3))                                        # (N, C)
    r = jnp.maximum(s @ w_reduce.reshape(Crd, C).T + b_reduce, 0.0)
    g = jax.nn.sigmoid(r @ w_expand.reshape(C, Crd).T + b_expand)  # (N, C)
    ref = x + y * g[:, :, None, None]

    assert out.shape == ref.shape, (out.shape, ref.shape)
    max_err = float(jnp.max(jnp.abs(out - ref)))
    assert jnp.allclose(out, ref, atol=1e-4, rtol=1e-4), max_err

    print("KERNEL_OK")
</pallas_src>

<mosaic_0001>
module attributes {stable_mosaic.version = 11 : i64} {
  func.func @_attention_block_kernel(%arg0: i32, %arg1: memref<1x32x256xf32, #tpu.memory_space<vmem>>, %arg2: memref<1x32xf32, #tpu.memory_space<vmem>>, %arg3: memref<1x32xf32, #tpu.memory_space<vmem>>, %arg4: memref<8x32xf32, #tpu.memory_space<vmem>>, %arg5: memref<1x8xf32, #tpu.memory_space<vmem>>, %arg6: memref<32x8xf32, #tpu.memory_space<vmem>>, %arg7: memref<1x32xf32, #tpu.memory_space<vmem>>, %arg8: memref<1x32x256xf32, #tpu.memory_space<vmem>>) attributes {dimension_semantics = [#tpu.dimension_semantics<parallel>], iteration_bounds = array<i64: 2>, scalar_prefetch = 0 : i64, scratch_operands = 0 : i64, tpu.core_type = #tpu.core_type<tc>, window_params = [{transform_indices = @transform_0, window_bounds = array<i64: 1, 32, 256>}, {pipeline_mode = #tpu.pipeline_mode<synchronous>, transform_indices = @transform_1, window_bounds = array<i64: 1, 32>}, {pipeline_mode = #tpu.pipeline_mode<synchronous>, transform_indices = @transform_2, window_bounds = array<i64: 1, 32>}, {pipeline_mode = #tpu.pipeline_mode<synchronous>, transform_indices = @transform_3, window_bounds = array<i64: 8, 32>}, {pipeline_mode = #tpu.pipeline_mode<synchronous>, transform_indices = @transform_4, window_bounds = array<i64: 1, 8>}, {pipeline_mode = #tpu.pipeline_mode<synchronous>, transform_indices = @transform_5, window_bounds = array<i64: 32, 8>}, {pipeline_mode = #tpu.pipeline_mode<synchronous>, transform_indices = @transform_6, window_bounds = array<i64: 1, 32>}, {transform_indices = @transform_7, window_bounds = array<i64: 1, 32, 256>}]} {
    %c0 = arith.constant 0 : index
    %c0_0 = arith.constant 0 : index
    %c0_1 = arith.constant 0 : index
    %0 = vector.load %arg1[%c0, %c0_0, %c0_1] : memref<1x32x256xf32, #tpu.memory_space<vmem>>, vector<1x32x256xf32>
    %cst = arith.constant dense<0.000000e+00> : vector<1x32xf32>
    %1 = vector.multi_reduction <add>, %0, %cst [2] : vector<1x32x256xf32> to vector<1x32xf32>
    %cst_2 = arith.constant 3.906250e-03 : f32
    %2 = vector.broadcast %cst_2 : f32 to vector<1x32xf32>
    %3 = arith.mulf %1, %2 : vector<1x32xf32>
    %c0_3 = arith.constant 0 : index
    %c0_4 = arith.constant 0 : index
    %4 = vector.load %arg2[%c0_3, %c0_4] : memref<1x32xf32, #tpu.memory_space<vmem>>, vector<1x32xf32>
    %5 = arith.mulf %3, %4 : vector<1x32xf32>
    %c0_5 = arith.constant 0 : index
    %c0_6 = arith.constant 0 : index
    %6 = vector.load %arg3[%c0_5, %c0_6] : memref<1x32xf32, #tpu.memory_space<vmem>>, vector<1x32xf32>
    %7 = arith.addf %5, %6 : vector<1x32xf32>
    %8 = vector.shape_cast %7 : vector<1x32xf32> to vector<1x1x32xf32>
    %c0_7 = arith.constant 0 : index
    %c0_8 = arith.constant 0 : index
    %9 = vector.load %arg4[%c0_7, %c0_8] : memref<8x32xf32, #tpu.memory_space<vmem>>, vector<8x32xf32>
    %10 = vector.shape_cast %9 : vector<8x32xf32> to vector<1x8x32xf32>
    %11 = vector.broadcast %8 : vector<1x1x32xf32> to vector<1x8x32xf32>
    %12 = arith.mulf %11, %10 : vector<1x8x32xf32>
    %cst_9 = arith.constant dense<0.000000e+00> : vector<1x8xf32>
    %13 = vector.multi_reduction <add>, %12, %cst_9 [2] : vector<1x8x32xf32> to vector<1x8xf32>
    %c0_10 = arith.constant 0 : index
    %c0_11 = arith.constant 0 : index
    %14 = vector.load %arg5[%c0_10, %c0_11] : memref<1x8xf32, #tpu.memory_space<vmem>>, vector<1x8xf32>
    %15 = arith.addf %13, %14 : vector<1x8xf32>
    %cst_12 = arith.constant 0.000000e+00 : f32
    %16 = vector.broadcast %cst_12 : f32 to vector<1x8xf32>
    %17 = arith.maximumf %15, %16 : vector<1x8xf32>
    %18 = vector.shape_cast %17 : vector<1x8xf32> to vector<1x1x8xf32>
    %c0_13 = arith.constant 0 : index
    %c0_14 = arith.constant 0 : index
    %19 = vector.load %arg6[%c0_13, %c0_14] : memref<32x8xf32, #tpu.memory_space<vmem>>, vector<32x8xf32>
    %20 = vector.shape_cast %19 : vector<32x8xf32> to vector<1x32x8xf32>
    %21 = vector.broadcast %18 : vector<1x1x8xf32> to vector<1x32x8xf32>
    %22 = arith.mulf %21, %20 : vector<1x32x8xf32>
    %cst_15 = arith.constant dense<0.000000e+00> : vector<1x32xf32>
    %23 = vector.multi_reduction <add>, %22, %cst_15 [2] : vector<1x32x8xf32> to vector<1x32xf32>
    %c0_16 = arith.constant 0 : index
    %c0_17 = arith.constant 0 : index
    %24 = vector.load %arg7[%c0_16, %c0_17] : memref<1x32xf32, #tpu.memory_space<vmem>>, vector<1x32xf32>
    %25 = arith.addf %23, %24 : vector<1x32xf32>
    %26 = arith.negf %25 : vector<1x32xf32>
    %27 = math.exp %26 : vector<1x32xf32>
    %cst_18 = arith.constant 1.000000e+00 : f32
    %28 = vector.broadcast %cst_18 : f32 to vector<1x32xf32>
    %29 = arith.addf %28, %27 : vector<1x32xf32>
    %30 = arith.divf %28, %29 : vector<1x32xf32>
    %c0_19 = arith.constant 0 : index
    %c0_20 = arith.constant 0 : index
    %31 = vector.load %arg2[%c0_19, %c0_20] : memref<1x32xf32, #tpu.memory_space<vmem>>, vector<1x32xf32>
    %32 = arith.mulf %31, %30 : vector<1x32xf32>
    %cst_21 = arith.constant 1.000000e+00 : f32
    %33 = vector.broadcast %cst_21 : f32 to vector<1x32xf32>
    %34 = arith.addf %33, %32 : vector<1x32xf32>
    %c0_22 = arith.constant 0 : index
    %c0_23 = arith.constant 0 : index
    %35 = vector.load %arg3[%c0_22, %c0_23] : memref<1x32xf32, #tpu.memory_space<vmem>>, vector<1x32xf32>
    %36 = arith.mulf %35, %30 : vector<1x32xf32>
    %37 = vector.shape_cast %34 : vector<1x32xf32> to vector<1x32x1xf32>
    %38 = vector.broadcast %37 : vector<1x32x1xf32> to vector<1x32x256xf32>
    %39 = arith.mulf %0, %38 : vector<1x32x256xf32>
    %40 = vector.shape_cast %36 : vector<1x32xf32> to vector<1x32x1xf32>
    %41 = vector.broadcast %40 : vector<1x32x1xf32> to vector<1x32x256xf32>
    %42 = arith.addf %39, %41 : vector<1x32x256xf32>
    %c0_24 = arith.constant 0 : index
    %c0_25 = arith.constant 0 : index
    %c0_26 = arith.constant 0 : index
    %43 = vector.load %arg8[%c0_24, %c0_25, %c0_26] : memref<1x32x256xf32, #tpu.memory_space<vmem>>, vector<1x32x256xf32>
    tpu.vector_store %arg8[%c0_24, %c0_25, %c0_26], %42 {strides = array<i32>} : memref<1x32x256xf32, #tpu.memory_space<vmem>>, vector<1x32x256xf32>,
    return
  }
  func.func @transform_0(%arg0: i32) -> (i32, i32, i32) {
    %c0_i32 = arith.constant 0 : i32
    %c0_i32_0 = arith.constant 0 : i32
    %c0_i32_1 = arith.constant 0 : i32
    return %arg0, %c0_i32, %c0_i32_0 : i32, i32, i32
  }
  func.func @transform_1(%arg0: i32) -> (i32, i32) {
    %c0_i32 = arith.constant 0 : i32
    %c0_i32_0 = arith.constant 0 : i32
    %c0_i32_1 = arith.constant 0 : i32
    return %c0_i32, %c0_i32_0 : i32, i32
  }
  func.func @transform_2(%arg0: i32) -> (i32, i32) {
    %c0_i32 = arith.constant 0 : i32
    %c0_i32_0 = arith.constant 0 : i32
    %c0_i32_1 = arith.constant 0 : i32
    return %c0_i32, %c0_i32_0 : i32, i32
  }
  func.func @transform_3(%arg0: i32) -> (i32, i32) {
    %c0_i32 = arith.constant 0 : i32
    %c0_i32_0 = arith.constant 0 : i32
    %c0_i32_1 = arith.constant 0 : i32
    return %c0_i32, %c0_i32_0 : i32, i32
  }
  func.func @transform_4(%arg0: i32) -> (i32, i32) {
    %c0_i32 = arith.constant 0 : i32
    %c0_i32_0 = arith.constant 0 : i32
    %c0_i32_1 = arith.constant 0 : i32
    return %c0_i32, %c0_i32_0 : i32, i32
  }
  func.func @transform_5(%arg0: i32) -> (i32, i32) {
    %c0_i32 = arith.constant 0 : i32
    %c0_i32_0 = arith.constant 0 : i32
    %c0_i32_1 = arith.constant 0 : i32
    return %c0_i32, %c0_i32_0 : i32, i32
  }
  func.func @transform_6(%arg0: i32) -> (i32, i32) {
    %c0_i32 = arith.constant 0 : i32
    %c0_i32_0 = arith.constant 0 : i32
    %c0_i32_1 = arith.constant 0 : i32
    return %c0_i32, %c0_i32_0 : i32, i32
  }
  func.func @transform_7(%arg0: i32) -> (i32, i32, i32) {
    %c0_i32 = arith.constant 0 : i32
    %c0_i32_0 = arith.constant 0 : i32
    %c0_i32_1 = arith.constant 0 : i32
    return %arg0, %c0_i32, %c0_i32_0 : i32, i32, i32
  }
}

</mosaic_0001>

<llo_original>
// kernel: tpu_custom_call.1
$region0: #{tpu_custom_call.1}
  #allocation0 [shape = 'u32[]', space=smem, size = 0x4, offset = 0x4, fixed_abs, tag = 'smem constant byte address 0x4 - core index']
  #allocation1 [shape = 'u32[144,128]{1,0:T(1,128)}', space=vmem, size = 0x12000, scoped, tag = 'internal scratch']
  %s0 = inlined_call_operand.hbm [shape: f32[2,32,256], index: 0, kind: input, shape index: {}]
  %s1 = inlined_call_operand.vmem [shape: f32[1,32], index: 1, kind: input, shape index: {}]
  %s2 = inlined_call_operand.vmem [shape: f32[1,32], index: 2, kind: input, shape index: {}]
  %s3 = inlined_call_operand.vmem [shape: f32[8,32], index: 3, kind: input, shape index: {}]
  %s4 = inlined_call_operand.vmem [shape: f32[1,8], index: 4, kind: input, shape index: {}]
  %s5 = inlined_call_operand.vmem [shape: f32[32,8], index: 5, kind: input, shape index: {}]
  %s6 = inlined_call_operand.vmem [shape: f32[1,32], index: 6, kind: input, shape index: {}]
  %s7 = inlined_call_operand.hbm [shape: f32[2,32,256], index: 7, kind: output, shape index: {}]
  %s8 = sld [smem:[#allocation0]]
  $region65: #{tpu_custom_call.1} parent=0
    _
  %s10 = ssub.s32 1, %s8
  %s11 = scalar_select 0, %s10, %s8
  $region1: #{tpu_custom_call.1} parent=0
    #allocation2 [shape = 'u8[65536]{0}', space=vmem, size = 0x10000, scoped, tag = 'input window, operand 0']
    #allocation3 [shape = 's32[2]{0}', space=sflag, size = 0x8, scoped, tag = 'scoped memory for tpu_custom_call.1']
    #allocation4 [shape = 's32[2]{0}', space=sflag, size = 0x8, scoped, tag = 'scoped memory for tpu_custom_call.1']
    #allocation5 [shape = 'u8[65536]{0}', space=vmem, size = 0x10000, scoped, tag = 'output window, operand 0']
    %12 = vsyncpa [#allocation3], 0
    %s13 = scalar_lea.sflag [#allocation3], 1
    %14 = vsyncpa %s13, 0
    %15 = vsyncpa [#allocation4], 0
    %s16 = scalar_lea.sflag [#allocation4], 1
    %17 = vsyncpa %s16, 0
    loop: start=0, step=1, limit=4
    $region2: #{tpu_custom_call.1} parent=1 // loop_pre_header
      _
    $region3: #{tpu_custom_call.1} parent=1 // loop_header
      %s19 = sphi 0, %s23
      %p20 = scmp.ge.s32.totalorder %s19, 4
      %s29 = sphi 0, %s31
      %s32 = sphi 0, %s29
      %s33 = sphi 0, %s32
      %s49 = sphi 0, %s33
      %s53 = sphi 0, %s53
      %s55 = sphi 0, %s53
      %s56 = sphi 0, %s55
      %s70 = sphi 0, %s56
      %s74 = sphi 0, %s74
      %s76 = sphi 0, %s74
      %s77 = sphi 0, %s76
      %s91 = sphi 0, %s77
      %s95 = sphi 0, %s95
      %s97 = sphi 0, %s95
      %s98 = sphi 0, %s97
      %s112 = sphi 0, %s98
      %s116 = sphi 0, %s116
      %s118 = sphi 0, %s116
      %s119 = sphi 0, %s118
      %s133 = sphi 0, %s119
      %s137 = sphi 0, %s137
      %s139 = sphi 0, %s137
      %s140 = sphi 0, %s139
      %s154 = sphi 0, %s140
      %s158 = sphi 0, %s158
      %s160 = sphi 0, %s158
      %s161 = sphi 0, %s160
      %s175 = sphi 0, %s161
      %s181 = sphi 0, %s183
      %s184 = sphi 0, %s181
      %s185 = sphi 0, %s184
      %s201 = sphi 0, %s185
    $region4: #{tpu_custom_call.1} parent=1 // loop_header_branch
      %22 = sbr.rel (%p20) target = $region8
    $region5: #{tpu_custom_call.1} parent=1 // loop_body
      %s24 = ssub.s32 %s19, 1
      %s25 = ssub.s32 %s19, 2
      %s26 = sadd.s32 %s19, 1
      %s27 = ssub.s32 %s19, %s26
      %p28 = scmp.eq.s32.totalorder %s27, 0
      %s30 = sadd.s32 %s29, 1
      %s31 = scalar_select %p28, %s29, %s30
      %p34 = pneg %p28
      %p35 = scmp.eq.s32.totalorder %s19, 1
      %p36 = por %p34, %p35
      %p37 = scmp.ne.s32.totalorder %s29, %s32
      %p38 = scmp.eq.s32.totalorder %s19, 0
      %p39 = por %p37, %p38
      %p40 = scmp.ne.s32.totalorder %s29, %s32
      %p41 = scmp.eq.s32.totalorder %s24, 1
      %p42 = por %p40, %p41
      %p43 = scmp.ne.s32.totalorder %s32, %s33
      %p44 = scmp.eq.s32.totalorder %s24, 0
      %p45 = por %p43, %p44
      %p46 = scmp.ne.s32.totalorder %s32, %s33
      %p47 = scmp.eq.s32.totalorder %s25, 1
      %p48 = por %p46, %p47
      %p50 = scmp.ne.s32.totalorder %s33, %s49
      %p51 = scmp.eq.s32.totalorder %s25, 0
      %p52 = por %p50, %p51
      %s54 = sadd.s32 %s53, 1
      %p57 = scmp.eq.s32.totalorder %s19, 1
      %p58 = scmp.ne.s32.totalorder %s53, %s55
      %p59 = scmp.eq.s32.totalorder %s19, 0
      %p60 = por %p58, %p59
      %p61 = scmp.ne.s32.totalorder %s53, %s55
      %p62 = scmp.eq.s32.totalorder %s24, 1
      %p63 = por %p61, %p62
      %p64 = scmp.ne.s32.totalorder %s55, %s56
      %p65 = scmp.eq.s32.totalorder %s24, 0
      %p66 = por %p64, %p65
      %p67 = scmp.ne.s32.totalorder %s55, %s56
      %p68 = scmp.eq.s32.totalorder %s25, 1
      %p69 = por %p67, %p68
      %p71 = scmp.ne.s32.totalorder %s56, %s70
      %p72 = scmp.eq.s32.totalorder %s25, 0
      %p73 = por %p71, %p72
      %s75 = sadd.s32 %s74, 1
      %p78 = scmp.eq.s32.totalorder %s19, 1
      %p79 = scmp.ne.s32.totalorder %s74, %s76
      %p80 = scmp.eq.s32.totalorder %s19, 0
      %p81 = por %p79, %p80
      %p82 = scmp.ne.s32.totalorder %s74, %s76
      %p83 = scmp.eq.s32.totalorder %s24, 1
      %p84 = por %p82, %p83
      %p85 = scmp.ne.s32.totalorder %s76, %s77
      %p86 = scmp.eq.s32.totalorder %s24, 0
      %p87 = por %p85, %p86
      %p88 = scmp.ne.s32.totalorder %s76, %s77
      %p89 = scmp.eq.s32.totalorder %s25, 1
      %p90 = por %p88, %p89
      %p92 = scmp.ne.s32.totalorder %s77, %s91
      %p93 = scmp.eq.s32.totalorder %s25, 0
      %p94 = por %p92, %p93
      %s96 = sadd.s32 %s95, 1
      %p99 = scmp.eq.s32.totalorder %s19, 1
      %p100 = scmp.ne.s32.totalorder %s95, %s97
      %p101 = scmp.eq.s32.totalorder %s19, 0
      %p102 = por %p100, %p101
      %p103 = scmp.ne.s32.totalorder %s95, %s97
      %p104 = scmp.eq.s32.totalorder %s24, 1
      %p105 = por %p103, %p104
      %p106 = scmp.ne.s32.totalorder %s97, %s98
      %p107 = scmp.eq.s32.totalorder %s24, 0
      %p108 = por %p106, %p107
      %p109 = scmp.ne.s32.totalorder %s97, %s98
      %p110 = scmp.eq.s32.totalorder %s25, 1
      %p111 = por %p109, %p110
      %p113 = scmp.ne.s32.totalorder %s98, %s112
      %p114 = scmp.eq.s32.totalorder %s25, 0
      %p115 = por %p113, %p114
      %s117 = sadd.s32 %s116, 1
      %p120 = scmp.eq.s32.totalorder %s19, 1
      %p121 = scmp.ne.s32.totalorder %s116, %s118
      %p122 = scmp.eq.s32.totalorder %s19, 0
      %p123 = por %p121, %p122
      %p124 = scmp.ne.s32.totalorder %s116, %s118
      %p125 = scmp.eq.s32.totalorder %s24, 1
      %p126 = por %p124, %p125
      %p127 = scmp.ne.s32.totalorder %s118, %s119
      %p128 = scmp.eq.s32.totalorder %s24, 0
      %p129 = por %p127, %p128
      %p130 = scmp.ne.s32.totalorder %s118, %s119
      %p131 = scmp.eq.s32.totalorder %s25, 1
      %p132 = por %p130, %p131
      %p134 = scmp.ne.s32.totalorder %s119, %s133
      %p135 = scmp.eq.s32.totalorder %s25, 0
      %p136 = por %p134, %p135
      %s138 = sadd.s32 %s137, 1
      %p141 = scmp.eq.s32.totalorder %s19, 1
      %p142 = scmp.ne.s32.totalorder %s137, %s139
      %p143 = scmp.eq.s32.totalorder %s19, 0
      %p144 = por %p142, %p143
      %p145 = scmp.ne.s32.totalorder %s137, %s139
      %p146 = scmp.eq.s32.totalorder %s24, 1
      %p147 = por %p145, %p146
      %p148 = scmp.ne.s32.totalorder %s139, %s140
      %p149 = scmp.eq.s32.totalorder %s24, 0
      %p150 = por %p148, %p149
      %p151 = scmp.ne.s32.totalorder %s139, %s140
      %p152 = scmp.eq.s32.totalorder %s25, 1
      %p153 = por %p151, %p152
      %p155 = scmp.ne.s32.totalorder %s140, %s154
      %p156 = scmp.eq.s32.totalorder %s25, 0
      %p157 = por %p155, %p156
      %s159 = sadd.s32 %s158, 1
      %p162 = scmp.eq.s32.totalorder %s19, 1
      %p163 = scmp.ne.s32.totalorder %s158, %s160
      %p164 = scmp.eq.s32.totalorder %s19, 0
      %p165 = por %p163, %p164
      %p166 = scmp.ne.s32.totalorder %s158, %s160
      %p167 = scmp.eq.s32.totalorder %s24, 1
      %p168 = por %p166, %p167
      %p169 = scmp.ne.s32.totalorder %s160, %s161
      %p170 = scmp.eq.s32.totalorder %s24, 0
      %p171 = por %p169, %p170
      %p172 = scmp.ne.s32.totalorder %s160, %s161
      %p173 = scmp.eq.s32.totalorder %s25, 1
      %p174 = por %p172, %p173
      %p176 = scmp.ne.s32.totalorder %s161, %s175
      %p177 = scmp.eq.s32.totalorder %s25, 0
      %p178 = por %p176, %p177
      %s179 = ssub.s32 %s19, %s26
      %p180 = scmp.eq.s32.totalorder %s179, 0
      %s182 = sadd.s32 %s181, 1
      %s183 = scalar_select %p180, %s181, %s182
      %p186 = pneg %p180
      %p187 = scmp.eq.s32.totalorder %s19, 1
      %p188 = por %p186, %p187
      %p189 = scmp.ne.s32.totalorder %s181, %s184
      %p190 = scmp.eq.s32.totalorder %s19, 0
      %p191 = por %p189, %p190
      %p192 = scmp.ne.s32.totalorder %s181, %s184
      %p193 = scmp.eq.s32.totalorder %s24, 1
      %p194 = por %p192, %p193
      %p195 = scmp.ne.s32.totalorder %s184, %s185
      %p196 = scmp.eq.s32.totalorder %s24, 0
      %p197 = por %p195, %p196
      %p198 = scmp.ne.s32.totalorder %s184, %s185
      %p199 = scmp.eq.s32.totalorder %s25, 1
      %p200 = por %p198, %p199
      %p202 = scmp.ne.s32.totalorder %s185, %s201
      %p203 = scmp.eq.s32.totalorder %s25, 0
      %p204 = por %p202, %p203
      %p205 = scmp.le.s32.totalorder 1, %s19
      %p206 = scmp.lt.s32.totalorder %s19, 3
      %p207 = pnand %p205, %p206
      %p208 = pneg %p207
      // Predicated region
      $region9: #{tpu_custom_call.1} parent=5 // pred_check
        _
      $region10: #{tpu_custom_call.1} parent=5 // pred_check_branch
        %210 = sbr.rel (%p207) target = $region12
      $region11: #{tpu_custom_call.1} parent=5 // pred_region
        %s211 = ssub.s32 %s19, 1
        // Predicated region
        $region13: #{tpu_custom_call.1} parent=11 // pred_check
          %p212 = pneg %p66
        $region14: #{tpu_custom_call.1} parent=11 // pred_check_branch
          %214 = sbr.rel (%p212) target = $region16
        $region15: #{tpu_custom_call.1} parent=11 // pred_region
          _
        $region16: #{tpu_custom_call.1} parent=11 // pred_fallthru
          _
        // Predicated region
        $region17: #{tpu_custom_call.1} parent=11 // pred_check
          %p215 = pneg %p87
        $region18: #{tpu_custom_call.1} parent=11 // pred_check_branch
          %217 = sbr.rel (%p215) target = $region20
        $region19: #{tpu_custom_call.1} parent=11 // pred_region
          _
        $region20: #{tpu_custom_call.1} parent=11 // pred_fallthru
          _
        // Predicated region
        $region21: #{tpu_custom_call.1} parent=11 // pred_check
          %p218 = pneg %p108
        $region22: #{tpu_custom_call.1} parent=11 // pred_check_branch
          %220 = sbr.rel (%p218) target = $region24
        $region23: #{tpu_custom_call.1} parent=11 // pred_region
          _
        $region24: #{tpu_custom_call.1} parent=11 // pred_fallthru
          _
        // Predicated region
        $region25: #{tpu_custom_call.1} parent=11 // pred_check
          %p221 = pneg %p129
        $region26: #{tpu_custom_call.1} parent=11 // pred_check_branch
          %223 = sbr.rel (%p221) target = $region28
        $region27: #{tpu_custom_call.1} parent=11 // pred_region
          _
        $region28: #{tpu_custom_call.1} parent=11 // pred_fallthru
          _
        // Predicated region
        $region29: #{tpu_custom_call.1} parent=11 // pred_check
          %p224 = pneg %p150
        $region30: #{tpu_custom_call.1} parent=11 // pred_check_branch
          %226 = sbr.rel (%p224) target = $region32
        $region31: #{tpu_custom_call.1} parent=11 // pred_region
          _
        $region32: #{tpu_custom_call.1} parent=11 // pred_fallthru
          _
        // Predicated region
        $region33: #{tpu_custom_call.1} parent=11 // pred_check
          %p227 = pneg %p171
        $region34: #{tpu_custom_call.1} parent=11 // pred_check_branch
          %229 = sbr.rel (%p227) target = $region36
        $region35: #{tpu_custom_call.1} parent=11 // pred_region
          _
        $region36: #{tpu_custom_call.1} parent=11 // pred_fallthru
          _
      $region12: #{tpu_custom_call.1} parent=5 // pred_fallthru
        _
      %p230 = scmp.lt.s32.totalorder %s19, 2
      // Predicated region
      $region37: #{tpu_custom_call.1} parent=5 // pred_check
        %p231 = pneg %p230
      $region38: #{tpu_custom_call.1} parent=5 // pred_check_branch
        %233 = sbr.rel (%p231) target = $region40
      $region39: #{tpu_custom_call.1} parent=5 // pred_region
        // Predicated region
        $region41: #{tpu_custom_call.1} parent=39 // pred_check
          %p234 = pneg %p39
        $region42: #{tpu_custom_call.1} parent=39 // pred_check_branch
          %236 = sbr.rel (%p234) target = $region44
        $region43: #{tpu_custom_call.1} parent=39 // pred_region
          %s237 = sand.u32 %s29, 1
          %s238 = scalar_lea.sflag [#allocation3], %s237
          %s239 = sand.u32 %s29, 1
          %s240 = smul.addr %s239, 64
          %s241 = scalar_lea.vmem [#allocation2], %s240
          %s243 = ssub.s32 1024, 1024
          %244 = vsyncadd %s238, %s243
          %s245 = smul.addr %s19, 8
          %s246 = smul.addr %s245, 128
          %s247 = scalar_lea.hbm %s0, %s246
          %s248 = sshll.u32 %s241, 4
          %s249 = int_to_ptr.vmem [resolvable:$true] %s248
          %254 = dma.hbm_to_vmem [thread:$0]  %s247, 1024, %s249, %s238, 256, 256, 16
        $region44: #{tpu_custom_call.1} parent=39 // pred_fallthru
          _
      $region40: #{tpu_custom_call.1} parent=5 // pred_fallthru
        _
      %p255 = scmp.le.s32.totalorder 1, %s19
      %p256 = scmp.lt.s32.totalorder %s19, 3
      %p257 = pnand %p255, %p256
      %p258 = pneg %p257
      // Predicated region
      $region45: #{tpu_custom_call.1} parent=5 // pred_check
        _
      $region46: #{tpu_custom_call.1} parent=5 // pred_check_branch
        %260 = sbr.rel (%p257) target = $region48
      $region47: #{tpu_custom_call.1} parent=5 // pred_region
        %s261 = ssub.s32 %s19, 1
        %s262 = sand.u32 %s32, 1
        %s263 = scalar_lea.sflag [#allocation3], %s262
        %s264 = sand.u32 %s32, 1
        %s265 = smul.addr %s264, 64
        %s266 = scalar_lea.vmem [#allocation2], %s265
        // Predicated region
        $region49: #{tpu_custom_call.1} parent=47 // pred_check
          %p267 = pneg %p45
        $region50: #{tpu_custom_call.1} parent=47 // pred_check_branch
          %269 = sbr.rel (%p267) target = $region52
        $region51: #{tpu_custom_call.1} parent=47 // pred_region
          %270 = dma.done %s263, 1024
        $region52: #{tpu_custom_call.1} parent=47 // pred_fallthru
          _
        %s271 = sand.u32 %s32, 1
        %s272 = scalar_lea.sflag [#allocation3], %s271
        %s273 = sand.u32 %s32, 1
        %s274 = smul.addr %s273, 64
        %s275 = scalar_lea.vmem [#allocation2], %s274
        %p276 = pneg %p45
        %p277 = pneg %p42
        %p278 = pneg %p66
        %p279 = pneg %p63
        %p280 = pneg %p87
        %p281 = pneg %p84
        %p282 = pneg %p108
        %p283 = pneg %p105
        %p284 = pneg %p129
        %p285 = pneg %p126
        %p286 = pneg %p150
        %p287 = pneg %p147
        %p288 = pneg %p171
        %p289 = pneg %p168
        %p290 = pneg %p197
        %p291 = pneg %p194
        %s292 = sand.u32 %s184, 1
        %s293 = scalar_lea.sflag [#allocation4], %s292
        %s294 = sand.u32 %s184, 1
        %s295 = smul.addr %s294, 64
        %s296 = scalar_lea.vmem [#allocation5], %s295
        %v297 = vld [vmem:[%s266] sm:$0xff]
        %v298 = vld [vmem:[%s266 + $0x8] sm:$0xff]
        %v299 = vld [vmem:[%s266 + $0x10] sm:$0xff]
        %v300 = vld [vmem:[%s266 + $0x18] sm:$0xff]
        %v301 = vld [vmem:[%s266 + $0x20] sm:$0xff]
        %v302 = vld [vmem:[%s266 + $0x28] sm:$0xff]
        %v303 = vld [vmem:[%s266 + $0x30] sm:$0xff]
        %v304 = vld [vmem:[%s266 + $0x38] sm:$0xff]
        %v305 = vadd.f32 %v297, %v298
        %306 = vadd.xlane.f32.xlu0 %v305
        %v307 = vpop.xlane.xlu0 %306
        %v308 = vadd.f32 %v299, %v300
        %309 = vadd.xlane.f32.xlu0 %v308
        %v310 = vpop.xlane.xlu0 %309
        %v311 = vadd.f32 %v301, %v302
        %312 = vadd.xlane.f32.xlu0 %v311
        %v313 = vpop.xlane.xlu0 %312
        %v314 = vadd.f32 %v303, %v304
        %315 = vadd.xlane.f32.xlu0 %v314
        %v316 = vpop.xlane.xlu0 %315
        %v317 = vmul.f32 %v307, 0.00390625
        %v318 = vmul.f32 %v310, 0.00390625
        %v319 = vmul.f32 %v313, 0.00390625
        %v320 = vmul.f32 %v316, 0.00390625
        %v321 = vld [vmem:[%s1] sm:$0x1]
        %v323 = vlaneseq
        %v324 = vshrl.u32 %v323, 7
        %v325 = vsub.s32 0, %v324
        %v326 = vrot.slane %v321, %v325
        %328 = vbcast.lane.b32.xlu0 %v326, 256
        %v329 = vpop.permute.xlu0 %328
        %s331 = sor.u32 256, 8
        %332 = vbcast.lane.b32.xlu0 %v326, %s331
        %v333 = vpop.permute.xlu0 %332
        %s335 = sor.u32 256, 16
        %336 = vbcast.lane.b32.xlu0 %v326, %s335
        %v337 = vpop.permute.xlu0 %336
        %s339 = sor.u32 256, 24
        %340 = vbcast.lane.b32.xlu0 %v326, %s339
        %v341 = vpop.permute.xlu0 %340
        %v346 = vmul.f32 %v317, %v329
        %v347 = vmul.f32 %v318, %v333
        %v348 = vmul.f32 %v319, %v337
        %v349 = vmul.f32 %v320, %v341
        %v350 = vld [vmem:[%s2] sm:$0x1]
        %v352 = vlaneseq
        %v353 = vshrl.u32 %v352, 7
        %v354 = vsub.s32 0, %v353
        %v355 = vrot.slane %v350, %v354
        %357 = vbcast.lane.b32.xlu0 %v355, 256
        %v358 = vpop.permute.xlu0 %357
        %s360 = sor.u32 256, 8
        %361 = vbcast.lane.b32.xlu0 %v355, %s360
        %v362 = vpop.permute.xlu0 %361
        %s364 = sor.u32 256, 16
        %365 = vbcast.lane.b32.xlu0 %v355, %s364
        %v366 = vpop.permute.xlu0 %365
        %s368 = sor.u32 256, 24
        %369 = vbcast.lane.b32.xlu0 %v355, %s368
        %v370 = vpop.permute.xlu0 %369
        %v375 = vadd.f32 %v346, %v358
        %v376 = vadd.f32 %v347, %v362
        %v377 = vadd.f32 %v348, %v366
        %v378 = vadd.f32 %v349, %v370
        %v379 = vld [vmem:[%s3] sm:$0xff]
        %v381 = vlaneseq
        %v382 = vshrl.u32 %v381, 7
        %v383 = vsub.s32 0, %v382
        %v384 = vrot.slane %v379, %v383
        %386 = vbcast.lane.b32.xlu0 %v384, 256
        %v387 = vpop.permute.xlu0 %386
        %s389 = sor.u32 256, 8
        %390 = vbcast.lane.b32.xlu0 %v384, %s389
        %v391 = vpop.permute.xlu0 %390
        %s393 = sor.u32 256, 16
        %394 = vbcast.lane.b32.xlu0 %v384, %s393
        %v395 = vpop.permute.xlu0 %394
        %s397 = sor.u32 256, 24
        %398 = vbcast.lane.b32.xlu0 %v384, %s397
        %v399 = vpop.permute.xlu0 %398
        %v400 = vlaneseq
        %v401 = vshrl.u32 %v400, 7
        %v402 = vsub.s32 1, %v401
        %v403 = vrot.slane %v379, %v402
        %405 = vbcast.lane.b32.xlu0 %v403, 256
        %v406 = vpop.permute.xlu0 %405
        %s408 = sor.u32 256, 8
        %409 = vbcast.lane.b32.xlu0 %v403, %s408
        %v410 = vpop.permute.xlu0 %409
        %s412 = sor.u32 256, 16
        %413 = vbcast.lane.b32.xlu0 %v403, %s412
        %v414 = vpop.permute.xlu0 %413
        %s416 = sor.u32 256, 24
        %417 = vbcast.lane.b32.xlu0 %v403, %s416
        %v418 = vpop.permute.xlu0 %417
        %v419 = vlaneseq
        %v420 = vshrl.u32 %v419, 7
        %v421 = vsub.s32 2, %v420
        %v422 = vrot.slane %v379, %v421
        %424 = vbcast.lane.b32.xlu0 %v422, 256
        %v425 = vpop.permute.xlu0 %424
        %s427 = sor.u32 256, 8
        %428 = vbcast.lane.b32.xlu0 %v422, %s427
        %v429 = vpop.permute.xlu0 %428
        %s431 = sor.u32 256, 16
        %432 = vbcast.lane.b32.xlu0 %v422, %s431
        %v433 = vpop.permute.xlu0 %432
        %s435 = sor.u32 256, 24
        %436 = vbcast.lane.b32.xlu0 %v422, %s435
        %v437 = vpop.permute.xlu0 %436
        %v438 = vlaneseq
        %v439 = vshrl.u32 %v438, 7
        %v440 = vsub.s32 3, %v439
        %v441 = vrot.slane %v379, %v440
        %443 = vbcast.lane.b32.xlu0 %v441, 256
        %v444 = vpop.permute.xlu0 %443
        %s446 = sor.u32 256, 8
        %447 = vbcast.lane.b32.xlu0 %v441, %s446
        %v448 = vpop.permute.xlu0 %447
        %s450 = sor.u32 256, 16
        %451 = vbcast.lane.b32.xlu0 %v441, %s450
        %v452 = vpop.permute.xlu0 %451
        %s454 = sor.u32 256, 24
        %455 = vbcast.lane.b32.xlu0 %v441, %s454
        %v456 = vpop.permute.xlu0 %455
        %v457 = vlaneseq
        %v458 = vshrl.u32 %v457, 7
        %v459 = vsub.s32 4, %v458
        %v460 = vrot.slane %v379, %v459
        %462 = vbcast.lane.b32.xlu0 %v460, 256
        %v463 = vpop.permute.xlu0 %462
        %s465 = sor.u32 256, 8
        %466 = vbcast.lane.b32.xlu0 %v460, %s465
        %v467 = vpop.permute.xlu0 %466
        %s469 = sor.u32 256, 16
        %470 = vbcast.lane.b32.xlu0 %v460, %s469
        %v471 = vpop.permute.xlu0 %470
        %s473 = sor.u32 256, 24
        %474 = vbcast.lane.b32.xlu0 %v460, %s473
        %v475 = vpop.permute.xlu0 %474
        %v476 = vlaneseq
        %v477 = vshrl.u32 %v476, 7
        %v478 = vsub.s32 5, %v477
        %v479 = vrot.slane %v379, %v478
        %481 = vbcast.lane.b32.xlu0 %v479, 256
        %v482 = vpop.permute.xlu0 %481
        %s484 = sor.u32 256, 8
        %485 = vbcast.lane.b32.xlu0 %v479, %s484
        %v486 = vpop.permute.xlu0 %485
        %s488 = sor.u32 256, 16
        %489 = vbcast.lane.b32.xlu0 %v479, %s488
        %v490 = vpop.permute.xlu0 %489
        %s492 = sor.u32 256, 24
        %493 = vbcast.lane.b32.xlu0 %v479, %s492
        %v494 = vpop.permute.xlu0 %493
        %v495 = vlaneseq
        %v496 = vshrl.u32 %v495, 7
        %v497 = vsub.s32 6, %v496
        %v498 = vrot.slane %v379, %v497
        %500 = vbcast.lane.b32.xlu0 %v498, 256
        %v501 = vpop.permute.xlu0 %500
        %s503 = sor.u32 256, 8
        %504 = vbcast.lane.b32.xlu0 %v498, %s503
        %v505 = vpop.permute.xlu0 %504
        %s507 = sor.u32 256, 16
        %508 = vbcast.lane.b32.xlu0 %v498, %s507
        %v509 = vpop.permute.xlu0 %508
        %s511 = sor.u32 256, 24
        %512 = vbcast.lane.b32.xlu0 %v498, %s511
        %v513 = vpop.permute.xlu0 %512
        %v514 = vlaneseq
        %v515 = vshrl.u32 %v514, 7
        %v516 = vsub.s32 7, %v515
        %v517 = vrot.slane %v379, %v516
        %519 = vbcast.lane.b32.xlu0 %v517, 256
        %v520 = vpop.permute.xlu0 %519
        %s522 = sor.u32 256, 8
        %523 = vbcast.lane.b32.xlu0 %v517, %s522
        %v524 = vpop.permute.xlu0 %523
        %s526 = sor.u32 256, 16
        %527 = vbcast.lane.b32.xlu0 %v517, %s526
        %v528 = vpop.permute.xlu0 %527
        %s530 = sor.u32 256, 24
        %531 = vbcast.lane.b32.xlu0 %v517, %s530
        %v532 = vpop.permute.xlu0 %531
        %v565 = vmul.f32 %v375, %v387
        %v566 = vmul.f32 %v376, %v391
        %v567 = vmul.f32 %v377, %v395
        %v568 = vmul.f32 %v378, %v399
        %v569 = vmul.f32 %v375, %v406
        %v570 = vmul.f32 %v376, %v410
        %v571 = vmul.f32 %v377, %v414
        %v572 = vmul.f32 %v378, %v418
        %v573 = vmul.f32 %v375, %v425
        %v574 = vmul.f32 %v376, %v429
        %v575 = vmul.f32 %v377, %v433
        %v576 = vmul.f32 %v378, %v437
        %v577 = vmul.f32 %v375, %v444
        %v578 = vmul.f32 %v376, %v448
        %v579 = vmul.f32 %v377, %v452
        %v580 = vmul.f32 %v378, %v456
        %v581 = vmul.f32 %v375, %v463
        %v582 = vmul.f32 %v376, %v467
        %v583 = vmul.f32 %v377, %v471
        %v584 = vmul.f32 %v378, %v475
        %v585 = vmul.f32 %v375, %v482
        %v586 = vmul.f32 %v376, %v486
        %v587 = vmul.f32 %v377, %v490
        %v588 = vmul.f32 %v378, %v494
        %v589 = vmul.f32 %v375, %v501
        %v590 = vmul.f32 %v376, %v505
        %v591 = vmul.f32 %v377, %v509
        %v592 = vmul.f32 %v378, %v513
        %v593 = vmul.f32 %v375, %v520
        %v594 = vmul.f32 %v376, %v524
        %v595 = vmul.f32 %v377, %v528
        %v596 = vmul.f32 %v378, %v532
        %629 = vset.pattern.permute.xlu0 0
        %630 = vperm.xlu0 %629, %v565
        %v631 = vpop.permute.xlu0 %630
        %632 = vset.pattern.permute.xlu0 0
        %633 = vperm.xlu0 %632, %v566
        %v634 = vpop.permute.xlu0 %633
        %635 = vset.pattern.permute.xlu0 0
        %636 = vperm.xlu0 %635, %v567
        %v637 = vpop.permute.xlu0 %636
        %638 = vset.pattern.permute.xlu0 0
        %639 = vperm.xlu0 %638, %v568
        %v640 = vpop.permute.xlu0 %639
        %641 = vset.pattern.permute.xlu0 0
        %642 = vperm.xlu0 %641, %v569
        %v643 = vpop.permute.xlu0 %642
        %644 = vset.pattern.permute.xlu0 0
        %645 = vperm.xlu0 %644, %v570
        %v646 = vpop.permute.xlu0 %645
        %647 = vset.pattern.permute.xlu0 0
        %648 = vperm.xlu0 %647, %v571
        %v649 = vpop.permute.xlu0 %648
        %650 = vset.pattern.permute.xlu0 0
        %651 = vperm.xlu0 %650, %v572
        %v652 = vpop.permute.xlu0 %651
        %653 = vset.pattern.permute.xlu0 0
        %654 = vperm.xlu0 %653, %v573
        %v655 = vpop.permute.xlu0 %654
        %656 = vset.pattern.permute.xlu0 0
        %657 = vperm.xlu0 %656, %v574
        %v658 = vpop.permute.xlu0 %657
        %659 = vset.pattern.permute.xlu0 0
        %660 = vperm.xlu0 %659, %v575
        %v661 = vpop.permute.xlu0 %660
        %662 = vset.pattern.permute.xlu0 0
        %663 = vperm.xlu0 %662, %v576
        %v664 = vpop.permute.xlu0 %663
        %665 = vset.pattern.permute.xlu0 0
        %666 = vperm.xlu0 %665, %v577
        %v667 = vpop.permute.xlu0 %666
        %668 = vset.pattern.permute.xlu0 0
        %669 = vperm.xlu0 %668, %v578
        %v670 = vpop.permute.xlu0 %669
        %671 = vset.pattern.permute.xlu0 0
        %672 = vperm.xlu0 %671, %v579
        %v673 = vpop.permute.xlu0 %672
        %674 = vset.pattern.permute.xlu0 0
        %675 = vperm.xlu0 %674, %v580
        %v676 = vpop.permute.xlu0 %675
        %677 = vset.pattern.permute.xlu0 0
        %678 = vperm.xlu0 %677, %v581
        %v679 = vpop.permute.xlu0 %678
        %680 = vset.pattern.permute.xlu0 0
        %681 = vperm.xlu0 %680, %v582
        %v682 = vpop.permute.xlu0 %681
        %683 = vset.pattern.permute.xlu0 0
        %684 = vperm.xlu0 %683, %v583
        %v685 = vpop.permute.xlu0 %684
        %686 = vset.pattern.permute.xlu0 0
        %687 = vperm.xlu0 %686, %v584
        %v688 = vpop.permute.xlu0 %687
        %689 = vset.pattern.permute.xlu0 0
        %690 = vperm.xlu0 %689, %v585
        %v691 = vpop.permute.xlu0 %690
        %692 = vset.pattern.permute.xlu0 0
        %693 = vperm.xlu0 %692, %v586
        %v694 = vpop.permute.xlu0 %693
        %695 = vset.pattern.permute.xlu0 0
        %696 = vperm.xlu0 %695, %v587
        %v697 = vpop.permute.xlu0 %696
        %698 = vset.pattern.permute.xlu0 0
        %699 = vperm.xlu0 %698, %v588
        %v700 = vpop.permute.xlu0 %699
        %701 = vset.pattern.permute.xlu0 0
        %702 = vperm.xlu0 %701, %v589
        %v703 = vpop.permute.xlu0 %702
        %704 = vset.pattern.permute.xlu0 0
        %705 = vperm.xlu0 %704, %v590
        %v706 = vpop.permute.xlu0 %705
        %707 = vset.pattern.permute.xlu0 0
        %708 = vperm.xlu0 %707, %v591
        %v709 = vpop.permute.xlu0 %708
        %710 = vset.pattern.permute.xlu0 0
        %711 = vperm.xlu0 %710, %v592
        %v712 = vpop.permute.xlu0 %711
        %713 = vset.pattern.permute.xlu0 0
        %714 = vperm.xlu0 %713, %v593
        %v715 = vpop.permute.xlu0 %714
        %716 = vset.pattern.permute.xlu0 0
        %717 = vperm.xlu0 %716, %v594
        %v718 = vpop.permute.xlu0 %717
        %719 = vset.pattern.permute.xlu0 0
        %720 = vperm.xlu0 %719, %v595
        %v721 = vpop.permute.xlu0 %720
        %722 = vset.pattern.permute.xlu0 0
        %723 = vperm.xlu0 %722, %v596
        %v724 = vpop.permute.xlu0 %723
        %v725 = vlaneseq
        %v726 = vand.u32 %v725, 127
        %v727 = vlaneseq
        %v728 = vshrl.u32 %v727, 7
        %v729 = vsub.s32 %v726, %v728
        %v730 = vrot.slane %v631, %v729
        %v731 = vadd.s32 %v726, 4294967288
        %v732 = vlaneseq
        %v733 = vshrl.u32 %v732, 7
        %v734 = vsub.s32 %v731, %v733
        %v735 = vrot.slane %v634, %v734
        %vm736 = vcmask 130112
        %v737 = vsel %vm736, %v735, %v730
        %v738 = vadd.s32 %v726, 4294967280
        %v739 = vlaneseq
        %v740 = vshrl.u32 %v739, 7
        %v741 = vsub.s32 %v738, %v740
        %v742 = vrot.slane %v637, %v741
        %vm743 = vcmask 195712
        %v744 = vsel %vm743, %v742, %v737
        %v745 = vadd.s32 %v726, 4294967272
        %v746 = vlaneseq
        %v747 = vshrl.u32 %v746, 7
        %v748 = vsub.s32 %v745, %v747
        %v749 = vrot.slane %v640, %v748
        %vm750 = vcmask 261312
        %v751 = vsel %vm750, %v749, %v744
        %v752 = vlaneseq
        %v753 = vshrl.u32 %v752, 7
        %v754 = vsub.s32 %v726, %v753
        %v755 = vrot.slane %v643, %v754
        %v756 = vlaneseq
        %v757 = vshrl.u32 %v756, 7
        %v758 = vsub.s32 %v731, %v757
        %v759 = vrot.slane %v646, %v758
        %v760 = vsel %vm736, %v759, %v755
        %v761 = vlaneseq
        %v762 = vshrl.u32 %v761, 7
        %v763 = vsub.s32 %v738, %v762
        %v764 = vrot.slane %v649, %v763
        %v765 = vsel %vm743, %v764, %v760
        %v766 = vlaneseq
        %v767 = vshrl.u32 %v766, 7
        %v768 = vsub.s32 %v745, %v767
        %v769 = vrot.slane %v652, %v768
        %v770 = vsel %vm750, %v769, %v765
        %v771 = vlaneseq
        %v772 = vshrl.u32 %v771, 7
        %v773 = vsub.s32 %v726, %v772
        %v774 = vrot.slane %v655, %v773
        %v775 = vlaneseq
        %v776 = vshrl.u32 %v775, 7
        %v777 = vsub.s32 %v731, %v776
        %v778 = vrot.slane %v658, %v777
        %v779 = vsel %vm736, %v778, %v774
        %v780 = vlaneseq
        %v781 = vshrl.u32 %v780, 7
        %v782 = vsub.s32 %v738, %v781
        %v783 = vrot.slane %v661, %v782
        %v784 = vsel %vm743, %v783, %v779
        %v785 = vlaneseq
        %v786 = vshrl.u32 %v785, 7
        %v787 = vsub.s32 %v745, %v786
        %v788 = vrot.slane %v664, %v787
        %v789 = vsel %vm750, %v788, %v784
        %v790 = vlaneseq
        %v791 = vshrl.u32 %v790, 7
        %v792 = vsub.s32 %v726, %v791
        %v793 = vrot.slane %v667, %v792
        %v794 = vlaneseq
        %v795 = vshrl.u32 %v794, 7
        %v796 = vsub.s32 %v731, %v795
        %v797 = vrot.slane %v670, %v796
        %v798 = vsel %vm736, %v797, %v793
        %v799 = vlaneseq
        %v800 = vshrl.u32 %v799, 7
        %v801 = vsub.s32 %v738, %v800
        %v802 = vrot.slane %v673, %v801
        %v803 = vsel %vm743, %v802, %v798
        %v804 = vlaneseq
        %v805 = vshrl.u32 %v804, 7
        %v806 = vsub.s32 %v745, %v805
        %v807 = vrot.slane %v676, %v806
        %v808 = vsel %vm750, %v807, %v803
        %v809 = vlaneseq
        %v810 = vshrl.u32 %v809, 7
        %v811 = vsub.s32 %v726, %v810
        %v812 = vrot.slane %v679, %v811
        %v813 = vlaneseq
        %v814 = vshrl.u32 %v813, 7
        %v815 = vsub.s32 %v731, %v814
        %v816 = vrot.slane %v682, %v815
        %v817 = vsel %vm736, %v816, %v812
        %v818 = vlaneseq
        %v819 = vshrl.u32 %v818, 7
        %v820 = vsub.s32 %v738, %v819
        %v821 = vrot.slane %v685, %v820
        %v822 = vsel %vm743, %v821, %v817
        %v823 = vlaneseq
        %v824 = vshrl.u32 %v823, 7
        %v825 = vsub.s32 %v745, %v824
        %v826 = vrot.slane %v688, %v825
        %v827 = vsel %vm750, %v826, %v822
        %v828 = vlaneseq
        %v829 = vshrl.u32 %v828, 7
        %v830 = vsub.s32 %v726, %v829
        %v831 = vrot.slane %v691, %v830
        %v832 = vlaneseq
        %v833 = vshrl.u32 %v832, 7
        %v834 = vsub.s32 %v731, %v833
        %v835 = vrot.slane %v694, %v834
        %v836 = vsel %vm736, %v835, %v831
        %v837 = vlaneseq
        %v838 = vshrl.u32 %v837, 7
        %v839 = vsub.s32 %v738, %v838
        %v840 = vrot.slane %v697, %v839
        %v841 = vsel %vm743, %v840, %v836
        %v842 = vlaneseq
        %v843 = vshrl.u32 %v842, 7
        %v844 = vsub.s32 %v745, %v843
        %v845 = vrot.slane %v700, %v844
        %v846 = vsel %vm750, %v845, %v841
        %v847 = vlaneseq
        %v848 = vshrl.u32 %v847, 7
        %v849 = vsub.s32 %v726, %v848
        %v850 = vrot.slane %v703, %v849
        %v851 = vlaneseq
        %v852 = vshrl.u32 %v851, 7
        %v853 = vsub.s32 %v731, %v852
        %v854 = vrot.slane %v706, %v853
        %v855 = vsel %vm736, %v854, %v850
        %v856 = vlaneseq
        %v857 = vshrl.u32 %v856, 7
        %v858 = vsub.s32 %v738, %v857
        %v859 = vrot.slane %v709, %v858
        %v860 = vsel %vm743, %v859, %v855
        %v861 = vlaneseq
        %v862 = vshrl.u32 %v861, 7
        %v863 = vsub.s32 %v745, %v862
        %v864 = vrot.slane %v712, %v863
        %v865 = vsel %vm750, %v864, %v860
        %v866 = vlaneseq
        %v867 = vshrl.u32 %v866, 7
        %v868 = vsub.s32 %v726, %v867
        %v869 = vrot.slane %v715, %v868
        %v870 = vlaneseq
        %v871 = vshrl.u32 %v870, 7
        %v872 = vsub.s32 %v731, %v871
        %v873 = vrot.slane %v718, %v872
        %v874 = vsel %vm736, %v873, %v869
        %v875 = vlaneseq
        %v876 = vshrl.u32 %v875, 7
        %v877 = vsub.s32 %v738, %v876
        %v878 = vrot.slane %v721, %v877
        %v879 = vsel %vm743, %v878, %v874
        %v880 = vlaneseq
        %v881 = vshrl.u32 %v880, 7
        %v882 = vsub.s32 %v745, %v881
        %v883 = vrot.slane %v724, %v882
        %v884 = vsel %vm750, %v883, %v879
        %vm885 = vcmask 1041409
        %v886 = vsel %vm885, %v770, %v751
        %vm887 = vcmask 1042434
        %v888 = vsel %vm887, %v789, %v886
        %vm889 = vcmask 1043459
        %v890 = vsel %vm889, %v808, %v888
        %vm891 = vcmask 1044484
        %v892 = vsel %vm891, %v827, %v890
        %vm893 = vcmask 1045509
        %v894 = vsel %vm893, %v846, %v892
        %vm895 = vcmask 1046534
        %v896 = vsel %vm895, %v865, %v894
        %vm897 = vcmask 1047559
        %v898 = vsel %vm897, %v884, %v896
        %vm900 = vcmask 261120
        %v901 = vsel %vm900, %v898, 0.0
        %902 = vadd.xlane.f32.xlu0 %v901
        %v903 = vpop.xlane.xlu0 %902
        %v904 = vld [vmem:[%s4] sm:$0x1]
        %v906 = vlaneseq
        %v907 = vshrl.u32 %v906, 7
        %v908 = vsub.s32 0, %v907
        %v909 = vrot.slane %v904, %v908
        %911 = vbcast.lane.b32.xlu0 %v909, 256
        %v912 = vpop.permute.xlu0 %911
        %v914 = vadd.f32 %v903, %v912
        %v915 = vmax.f32 %v914, 0.0
        %v916 = vld [vmem:[%s5] sm:$0xff]
        %v917 = vld [vmem:[%s5 + $0x8] sm:$0xff]
        %v918 = vld [vmem:[%s5 + $0x10] sm:$0xff]
        %v919 = vld [vmem:[%s5 + $0x18] sm:$0xff]
        %v924 = vlaneseq
        %v925 = vshrl.u32 %v924, 7
        %v926 = vsub.s32 0, %v925
        %v927 = vrot.slane %v916, %v926
        %929 = vbcast.lane.b32.xlu0 %v927, 256
        %v930 = vpop.permute.xlu0 %929
        %v931 = vlaneseq
        %v932 = vshrl.u32 %v931, 7
        %v933 = vsub.s32 1, %v932
        %v934 = vrot.slane %v916, %v933
        %936 = vbcast.lane.b32.xlu0 %v934, 256
        %v937 = vpop.permute.xlu0 %936
        %v938 = vlaneseq
        %v939 = vshrl.u32 %v938, 7
        %v940 = vsub.s32 2, %v939
        %v941 = vrot.slane %v916, %v940
        %943 = vbcast.lane.b32.xlu0 %v941, 256
        %v944 = vpop.permute.xlu0 %943
        %v945 = vlaneseq
        %v946 = vshrl.u32 %v945, 7
        %v947 = vsub.s32 3, %v946
        %v948 = vrot.slane %v916, %v947
        %950 = vbcast.lane.b32.xlu0 %v948, 256
        %v951 = vpop.permute.xlu0 %950
        %v952 = vlaneseq
        %v953 = vshrl.u32 %v952, 7
        %v954 = vsub.s32 4, %v953
        %v955 = vrot.slane %v916, %v954
        %957 = vbcast.lane.b32.xlu0 %v955, 256
        %v958 = vpop.permute.xlu0 %957
        %v959 = vlaneseq
        %v960 = vshrl.u32 %v959, 7
        %v961 = vsub.s32 5, %v960
        %v962 = vrot.slane %v916, %v961
        %964 = vbcast.lane.b32.xlu0 %v962, 256
        %v965 = vpop.permute.xlu0 %964
        %v966 = vlaneseq
        %v967 = vshrl.u32 %v966, 7
        %v968 = vsub.s32 6, %v967
        %v969 = vrot.slane %v916, %v968
        %971 = vbcast.lane.b32.xlu0 %v969, 256
        %v972 = vpop.permute.xlu0 %971
        %v973 = vlaneseq
        %v974 = vshrl.u32 %v973, 7
        %v975 = vsub.s32 7, %v974
        %v976 = vrot.slane %v916, %v975
        %978 = vbcast.lane.b32.xlu0 %v976, 256
        %v979 = vpop.permute.xlu0 %978
        %v980 = vlaneseq
        %v981 = vshrl.u32 %v980, 7
        %v982 = vsub.s32 0, %v981
        %v983 = vrot.slane %v917, %v982
        %985 = vbcast.lane.b32.xlu0 %v983, 256
        %v986 = vpop.permute.xlu0 %985
        %v987 = vlaneseq
        %v988 = vshrl.u32 %v987, 7
        %v989 = vsub.s32 1, %v988
        %v990 = vrot.slane %v917, %v989
        %992 = vbcast.lane.b32.xlu0 %v990, 256
        %v993 = vpop.permute.xlu0 %992
        %v994 = vlaneseq
        %v995 = vshrl.u32 %v994, 7
        %v996 = vsub.s32 2, %v995
        %v997 = vrot.slane %v917, %v996
        %999 = vbcast.lane.b32.xlu0 %v997, 256
        %v1000 = vpop.permute.xlu0 %999
        %v1001 = vlaneseq
        %v1002 = vshrl.u32 %v1001, 7
        %v1003 = vsub.s32 3, %v1002
        %v1004 = vrot.slane %v917, %v1003
        %1006 = vbcast.lane.b32.xlu0 %v1004, 256
        %v1007 = vpop.permute.xlu0 %1006
        %v1008 = vlaneseq
        %v1009 = vshrl.u32 %v1008, 7
        %v1010 = vsub.s32 4, %v1009
        %v1011 = vrot.slane %v917, %v1010
        %1013 = vbcast.lane.b32.xlu0 %v1011, 256
        %v1014 = vpop.permute.xlu0 %1013
        %v1015 = vlaneseq
        %v1016 = vshrl.u32 %v1015, 7
        %v1017 = vsub.s32 5, %v1016
        %v1018 = vrot.slane %v917, %v1017
        %1020 = vbcast.lane.b32.xlu0 %v1018, 256
        %v1021 = vpop.permute.xlu0 %1020
        %v1022 = vlaneseq
        %v1023 = vshrl.u32 %v1022, 7
        %v1024 = vsub.s32 6, %v1023
        %v1025 = vrot.slane %v917, %v1024
        %1027 = vbcast.lane.b32.xlu0 %v1025, 256
        %v1028 = vpop.permute.xlu0 %1027
        %v1029 = vlaneseq
        %v1030 = vshrl.u32 %v1029, 7
        %v1031 = vsub.s32 7, %v1030
        %v1032 = vrot.slane %v917, %v1031
        %1034 = vbcast.lane.b32.xlu0 %v1032, 256
        %v1035 = vpop.permute.xlu0 %1034
        %v1036 = vlaneseq
        %v1037 = vshrl.u32 %v1036, 7
        %v1038 = vsub.s32 0, %v1037
        %v1039 = vrot.slane %v918, %v1038
        %1041 = vbcast.lane.b32.xlu0 %v1039, 256
        %v1042 = vpop.permute.xlu0 %1041
        %v1043 = vlaneseq
        %v1044 = vshrl.u32 %v1043, 7
        %v1045 = vsub.s32 1, %v1044
        %v1046 = vrot.slane %v918, %v1045
        %1048 = vbcast.lane.b32.xlu0 %v1046, 256
        %v1049 = vpop.permute.xlu0 %1048
        %v1050 = vlaneseq
        %v1051 = vshrl.u32 %v1050, 7
        %v1052 = vsub.s32 2, %v1051
        %v1053 = vrot.slane %v918, %v1052
        %1055 = vbcast.lane.b32.xlu0 %v1053, 256
        %v1056 = vpop.permute.xlu0 %1055
        %v1057 = vlaneseq
        %v1058 = vshrl.u32 %v1057, 7
        %v1059 = vsub.s32 3, %v1058
        %v1060 = vrot.slane %v918, %v1059
        %1062 = vbcast.lane.b32.xlu0 %v1060, 256
        %v1063 = vpop.permute.xlu0 %1062
        %v1064 = vlaneseq
        %v1065 = vshrl.u32 %v1064, 7
        %v1066 = vsub.s32 4, %v1065
        %v1067 = vrot.slane %v918, %v1066
        %1069 = vbcast.lane.b32.xlu0 %v1067, 256
        %v1070 = vpop.permute.xlu0 %1069
        %v1071 = vlaneseq
        %v1072 = vshrl.u32 %v1071, 7
        %v1073 = vsub.s32 5, %v1072
        %v1074 = vrot.slane %v918, %v1073
        %1076 = vbcast.lane.b32.xlu0 %v1074, 256
        %v1077 = vpop.permute.xlu0 %1076
        %v1078 = vlaneseq
        %v1079 = vshrl.u32 %v1078, 7
        %v1080 = vsub.s32 6, %v1079
        %v1081 = vrot.slane %v918, %v1080
        %1083 = vbcast.lane.b32.xlu0 %v1081, 256
        %v1084 = vpop.permute.xlu0 %1083
        %v1085 = vlaneseq
        %v1086 = vshrl.u32 %v1085, 7
        %v1087 = vsub.s32 7, %v1086
        %v1088 = vrot.slane %v918, %v1087
        %1090 = vbcast.lane.b32.xlu0 %v1088, 256
        %v1091 = vpop.permute.xlu0 %1090
        %v1092 = vlaneseq
        %v1093 = vshrl.u32 %v1092, 7
        %v1094 = vsub.s32 0, %v1093
        %v1095 = vrot.slane %v919, %v1094
        %1097 = vbcast.lane.b32.xlu0 %v1095, 256
        %v1098 = vpop.permute.xlu0 %1097
        %v1099 = vlaneseq
        %v1100 = vshrl.u32 %v1099, 7
        %v1101 = vsub.s32 1, %v1100
        %v1102 = vrot.slane %v919, %v1101
        %1104 = vbcast.lane.b32.xlu0 %v1102, 256
        %v1105 = vpop.permute.xlu0 %1104
        %v1106 = vlaneseq
        %v1107 = vshrl.u32 %v1106, 7
        %v1108 = vsub.s32 2, %v1107
        %v1109 = vrot.slane %v919, %v1108
        %1111 = vbcast.lane.b32.xlu0 %v1109, 256
        %v1112 = vpop.permute.xlu0 %1111
        %v1113 = vlaneseq
        %v1114 = vshrl.u32 %v1113, 7
        %v1115 = vsub.s32 3, %v1114
        %v1116 = vrot.slane %v919, %v1115
        %1118 = vbcast.lane.b32.xlu0 %v1116, 256
        %v1119 = vpop.permute.xlu0 %1118
        %v1120 = vlaneseq
        %v1121 = vshrl.u32 %v1120, 7
        %v1122 = vsub.s32 4, %v1121
        %v1123 = vrot.slane %v919, %v1122
        %1125 = vbcast.lane.b32.xlu0 %v1123, 256
        %v1126 = vpop.permute.xlu0 %1125
        %v1127 = vlaneseq
        %v1128 = vshrl.u32 %v1127, 7
        %v1129 = vsub.s32 5, %v1128
        %v1130 = vrot.slane %v919, %v1129
        %1132 = vbcast.lane.b32.xlu0 %v1130, 256
        %v1133 = vpop.permute.xlu0 %1132
        %v1134 = vlaneseq
        %v1135 = vshrl.u32 %v1134, 7
        %v1136 = vsub.s32 6, %v1135
        %v1137 = vrot.slane %v919, %v1136
        %1139 = vbcast.lane.b32.xlu0 %v1137, 256
        %v1140 = vpop.permute.xlu0 %1139
        %v1141 = vlaneseq
        %v1142 = vshrl.u32 %v1141, 7
        %v1143 = vsub.s32 7, %v1142
        %v1144 = vrot.slane %v919, %v1143
        %1146 = vbcast.lane.b32.xlu0 %v1144, 256
        %v1147 = vpop.permute.xlu0 %1146
        %v1180 = vmul.f32 %v915, %v930
        %v1181 = vmul.f32 %v915, %v937
        %v1182 = vmul.f32 %v915, %v944
        %v1183 = vmul.f32 %v915, %v951
        %v1184 = vmul.f32 %v915, %v958
        %v1185 = vmul.f32 %v915, %v965
        %v1186 = vmul.f32 %v915, %v972
        %v1187 = vmul.f32 %v915, %v979
        %v1188 = vmul.f32 %v915, %v986
        %v1189 = vmul.f32 %v915, %v993
        %v1190 = vmul.f32 %v915, %v1000
        %v1191 = vmul.f32 %v915, %v1007
        %v1192 = vmul.f32 %v915, %v1014
        %v1193 = vmul.f32 %v915, %v1021
        %v1194 = vmul.f32 %v915, %v1028
        %v1195 = vmul.f32 %v915, %v1035
        %v1196 = vmul.f32 %v915, %v1042
        %v1197 = vmul.f32 %v915, %v1049
        %v1198 = vmul.f32 %v915, %v1056
        %v1199 = vmul.f32 %v915, %v1063
        %v1200 = vmul.f32 %v915, %v1070
        %v1201 = vmul.f32 %v915, %v1077
        %v1202 = vmul.f32 %v915, %v1084
        %v1203 = vmul.f32 %v915, %v1091
        %v1204 = vmul.f32 %v915, %v1098
        %v1205 = vmul.f32 %v915, %v1105
        %v1206 = vmul.f32 %v915, %v1112
        %v1207 = vmul.f32 %v915, %v1119
        %v1208 = vmul.f32 %v915, %v1126
        %v1209 = vmul.f32 %v915, %v1133
        %v1210 = vmul.f32 %v915, %v1140
        %v1211 = vmul.f32 %v915, %v1147
        %1244 = vset.pattern.permute.xlu0 0
        %1245 = vperm.xlu0 %1244, %v1180
        %v1246 = vpop.permute.xlu0 %1245
        %1247 = vset.pattern.permute.xlu0 0
        %1248 = vperm.xlu0 %1247, %v1181
        %v1249 = vpop.permute.xlu0 %1248
        %1250 = vset.pattern.permute.xlu0 0
        %1251 = vperm.xlu0 %1250, %v1182
        %v1252 = vpop.permute.xlu0 %1251
        %1253 = vset.pattern.permute.xlu0 0
        %1254 = vperm.xlu0 %1253, %v1183
        %v1255 = vpop.permute.xlu0 %1254
        %1256 = vset.pattern.permute.xlu0 0
        %1257 = vperm.xlu0 %1256, %v1184
        %v1258 = vpop.permute.xlu0 %1257
        %1259 = vset.pattern.permute.xlu0 0
        %1260 = vperm.xlu0 %1259, %v1185
        %v1261 = vpop.permute.xlu0 %1260
        %1262 = vset.pattern.permute.xlu0 0
        %1263 = vperm.xlu0 %1262, %v1186
        %v1264 = vpop.permute.xlu0 %1263
        %1265 = vset.pattern.permute.xlu0 0
        %1266 = vperm.xlu0 %1265, %v1187
        %v1267 = vpop.permute.xlu0 %1266
        %1268 = vset.pattern.permute.xlu0 0
        %1269 = vperm.xlu0 %1268, %v1188
        %v1270 = vpop.permute.xlu0 %1269
        %1271 = vset.pattern.permute.xlu0 0
        %1272 = vperm.xlu0 %1271, %v1189
        %v1273 = vpop.permute.xlu0 %1272
        %1274 = vset.pattern.permute.xlu0 0
        %1275 = vperm.xlu0 %1274, %v1190
        %v1276 = vpop.permute.xlu0 %1275
        %1277 = vset.pattern.permute.xlu0 0
        %1278 = vperm.xlu0 %1277, %v1191
        %v1279 = vpop.permute.xlu0 %1278
        %1280 = vset.pattern.permute.xlu0 0
        %1281 = vperm.xlu0 %1280, %v1192
        %v1282 = vpop.permute.xlu0 %1281
        %1283 = vset.pattern.permute.xlu0 0
        %1284 = vperm.xlu0 %1283, %v1193
        %v1285 = vpop.permute.xlu0 %1284
        %1286 = vset.pattern.permute.xlu0 0
        %1287 = vperm.xlu0 %1286, %v1194
        %v1288 = vpop.permute.xlu0 %1287
        %1289 = vset.pattern.permute.xlu0 0
        %1290 = vperm.xlu0 %1289, %v1195
        %v1291 = vpop.permute.xlu0 %1290
        %1292 = vset.pattern.permute.xlu0 0
        %1293 = vperm.xlu0 %1292, %v1196
        %v1294 = vpop.permute.xlu0 %1293
        %1295 = vset.pattern.permute.xlu0 0
        %1296 = vperm.xlu0 %1295, %v1197
        %v1297 = vpop.permute.xlu0 %1296
        %1298 = vset.pattern.permute.xlu0 0
        %1299 = vperm.xlu0 %1298, %v1198
        %v1300 = vpop.permute.xlu0 %1299
        %1301 = vset.pattern.permute.xlu0 0
        %1302 = vperm.xlu0 %1301, %v1199
        %v1303 = vpop.permute.xlu0 %1302
        %1304 = vset.pattern.permute.xlu0 0
        %1305 = vperm.xlu0 %1304, %v1200
        %v1306 = vpop.permute.xlu0 %1305
        %1307 = vset.pattern.permute.xlu0 0
        %1308 = vperm.xlu0 %1307, %v1201
        %v1309 = vpop.permute.xlu0 %1308
        %1310 = vset.pattern.permute.xlu0 0
        %1311 = vperm.xlu0 %1310, %v1202
        %v1312 = vpop.permute.xlu0 %1311
        %1313 = vset.pattern.permute.xlu0 0
        %1314 = vperm.xlu0 %1313, %v1203
        %v1315 = vpop.permute.xlu0 %1314
        %1316 = vset.pattern.permute.xlu0 0
        %1317 = vperm.xlu0 %1316, %v1204
        %v1318 = vpop.permute.xlu0 %1317
        %1319 = vset.pattern.permute.xlu0 0
        %1320 = vperm.xlu0 %1319, %v1205
        %v1321 = vpop.permute.xlu0 %1320
        %1322 = vset.pattern.permute.xlu0 0
        %1323 = vperm.xlu0 %1322, %v1206
        %v1324 = vpop.permute.xlu0 %1323
        %1325 = vset.pattern.permute.xlu0 0
        %1326 = vperm.xlu0 %1325, %v1207
        %v1327 = vpop.permute.xlu0 %1326
        %1328 = vset.pattern.permute.xlu0 0
        %1329 = vperm.xlu0 %1328, %v1208
        %v1330 = vpop.permute.xlu0 %1329
        %1331 = vset.pattern.permute.xlu0 0
        %1332 = vperm.xlu0 %1331, %v1209
        %v1333 = vpop.permute.xlu0 %1332
        %1334 = vset.pattern.permute.xlu0 0
        %1335 = vperm.xlu0 %1334, %v1210
        %v1336 = vpop.permute.xlu0 %1335
        %1337 = vset.pattern.permute.xlu0 0
        %1338 = vperm.xlu0 %1337, %v1211
        %v1339 = vpop.permute.xlu0 %1338
        %v1340 = vlaneseq
        %v1341 = vshrl.u32 %v1340, 7
        %v1342 = vsub.s32 %v726, %v1341
        %v1343 = vrot.slane %v1246, %v1342
        %v1344 = vlaneseq
        %v1345 = vshrl.u32 %v1344, 7
        %v1346 = vsub.s32 %v726, %v1345
        %v1347 = vrot.slane %v1249, %v1346
        %v1348 = vlaneseq
        %v1349 = vshrl.u32 %v1348, 7
        %v1350 = vsub.s32 %v726, %v1349
        %v1351 = vrot.slane %v1252, %v1350
        %v1352 = vlaneseq
        %v1353 = vshrl.u32 %v1352, 7
        %v1354 = vsub.s32 %v726, %v1353
        %v1355 = vrot.slane %v1255, %v1354
        %v1356 = vlaneseq
        %v1357 = vshrl.u32 %v1356, 7
        %v1358 = vsub.s32 %v726, %v1357
        %v1359 = vrot.slane %v1258, %v1358
        %v1360 = vlaneseq
        %v1361 = vshrl.u32 %v1360, 7
        %v1362 = vsub.s32 %v726, %v1361
        %v1363 = vrot.slane %v1261, %v1362
        %v1364 = vlaneseq
        %v1365 = vshrl.u32 %v1364, 7
        %v1366 = vsub.s32 %v726, %v1365
        %v1367 = vrot.slane %v1264, %v1366
        %v1368 = vlaneseq
        %v1369 = vshrl.u32 %v1368, 7
        %v1370 = vsub.s32 %v726, %v1369
        %v1371 = vrot.slane %v1267, %v1370
        %v1372 = vlaneseq
        %v1373 = vshrl.u32 %v1372, 7
        %v1374 = vsub.s32 %v726, %v1373
        %v1375 = vrot.slane %v1270, %v1374
        %v1376 = vlaneseq
        %v1377 = vshrl.u32 %v1376, 7
        %v1378 = vsub.s32 %v726, %v1377
        %v1379 = vrot.slane %v1273, %v1378
        %v1380 = vlaneseq
        %v1381 = vshrl.u32 %v1380, 7
        %v1382 = vsub.s32 %v726, %v1381
        %v1383 = vrot.slane %v1276, %v1382
        %v1384 = vlaneseq
        %v1385 = vshrl.u32 %v1384, 7
        %v1386 = vsub.s32 %v726, %v1385
        %v1387 = vrot.slane %v1279, %v1386
        %v1388 = vlaneseq
        %v1389 = vshrl.u32 %v1388, 7
        %v1390 = vsub.s32 %v726, %v1389
        %v1391 = vrot.slane %v1282, %v1390
        %v1392 = vlaneseq
        %v1393 = vshrl.u32 %v1392, 7
        %v1394 = vsub.s32 %v726, %v1393
        %v1395 = vrot.slane %v1285, %v1394
        %v1396 = vlaneseq
        %v1397 = vshrl.u32 %v1396, 7
        %v1398 = vsub.s32 %v726, %v1397
        %v1399 = vrot.slane %v1288, %v1398
        %v1400 = vlaneseq
        %v1401 = vshrl.u32 %v1400, 7
        %v1402 = vsub.s32 %v726, %v1401
        %v1403 = vrot.slane %v1291, %v1402
        %v1404 = vlaneseq
        %v1405 = vshrl.u32 %v1404, 7
        %v1406 = vsub.s32 %v726, %v1405
        %v1407 = vrot.slane %v1294, %v1406
        %v1408 = vlaneseq
        %v1409 = vshrl.u32 %v1408, 7
        %v1410 = vsub.s32 %v726, %v1409
        %v1411 = vrot.slane %v1297, %v1410
        %v1412 = vlaneseq
        %v1413 = vshrl.u32 %v1412, 7
        %v1414 = vsub.s32 %v726, %v1413
        %v1415 = vrot.slane %v1300, %v1414
        %v1416 = vlaneseq
        %v1417 = vshrl.u32 %v1416, 7
        %v1418 = vsub.s32 %v726, %v1417
        %v1419 = vrot.slane %v1303, %v1418
        %v1420 = vlaneseq
        %v1421 = vshrl.u32 %v1420, 7
        %v1422 = vsub.s32 %v726, %v1421
        %v1423 = vrot.slane %v1306, %v1422
        %v1424 = vlaneseq
        %v1425 = vshrl.u32 %v1424, 7
        %v1426 = vsub.s32 %v726, %v1425
        %v1427 = vrot.slane %v1309, %v1426
        %v1428 = vlaneseq
        %v1429 = vshrl.u32 %v1428, 7
        %v1430 = vsub.s32 %v726, %v1429
        %v1431 = vrot.slane %v1312, %v1430
        %v1432 = vlaneseq
        %v1433 = vshrl.u32 %v1432, 7
        %v1434 = vsub.s32 %v726, %v1433
        %v1435 = vrot.slane %v1315, %v1434
        %v1436 = vlaneseq
        %v1437 = vshrl.u32 %v1436, 7
        %v1438 = vsub.s32 %v726, %v1437
        %v1439 = vrot.slane %v1318, %v1438
        %v1440 = vlaneseq
        %v1441 = vshrl.u32 %v1440, 7
        %v1442 = vsub.s32 %v726, %v1441
        %v1443 = vrot.slane %v1321, %v1442
        %v1444 = vlaneseq
        %v1445 = vshrl.u32 %v1444, 7
        %v1446 = vsub.s32 %v726, %v1445
        %v1447 = vrot.slane %v1324, %v1446
        %v1448 = vlaneseq
        %v1449 = vshrl.u32 %v1448, 7
        %v1450 = vsub.s32 %v726, %v1449
        %v1451 = vrot.slane %v1327, %v1450
        %v1452 = vlaneseq
        %v1453 = vshrl.u32 %v1452, 7
        %v1454 = vsub.s32 %v726, %v1453
        %v1455 = vrot.slane %v1330, %v1454
        %v1456 = vlaneseq
        %v1457 = vshrl.u32 %v1456, 7
        %v1458 = vsub.s32 %v726, %v1457
        %v1459 = vrot.slane %v1333, %v1458
        %v1460 = vlaneseq
        %v1461 = vshrl.u32 %v1460, 7
        %v1462 = vsub.s32 %v726, %v1461
        %v1463 = vrot.slane %v1336, %v1462
        %v1464 = vlaneseq
        %v1465 = vshrl.u32 %v1464, 7
        %v1466 = vsub.s32 %v726, %v1465
        %v1467 = vrot.slane %v1339, %v1466
        %v1468 = vsel %vm885, %v1347, %v1343
        %v1469 = vsel %vm887, %v1351, %v1468
        %v1470 = vsel %vm889, %v1355, %v1469
        %v1471 = vsel %vm891, %v1359, %v1470
        %v1472 = vsel %vm893, %v1363, %v1471
        %v1473 = vsel %vm895, %v1367, %v1472
        %v1474 = vsel %vm897, %v1371, %v1473
        %v1475 = vsel %vm885, %v1379, %v1375
        %v1476 = vsel %vm887, %v1383, %v1475
        %v1477 = vsel %vm889, %v1387, %v1476
        %v1478 = vsel %vm891, %v1391, %v1477
        %v1479 = vsel %vm893, %v1395, %v1478
        %v1480 = vsel %vm895, %v1399, %v1479
        %v1481 = vsel %vm897, %v1403, %v1480
        %v1482 = vsel %vm885, %v1411, %v1407
        %v1483 = vsel %vm887, %v1415, %v1482
        %v1484 = vsel %vm889, %v1419, %v1483
        %v1485 = vsel %vm891, %v1423, %v1484
        %v1486 = vsel %vm893, %v1427, %v1485
        %v1487 = vsel %vm895, %v1431, %v1486
        %v1488 = vsel %vm897, %v1435, %v1487
        %v1489 = vsel %vm885, %v1443, %v1439
        %v1490 = vsel %vm887, %v1447, %v1489
        %v1491 = vsel %vm889, %v1451, %v1490
        %v1492 = vsel %vm891, %v1455, %v1491
        %v1493 = vsel %vm893, %v1459, %v1492
        %v1494 = vsel %vm895, %v1463, %v1493
        %v1495 = vsel %vm897, %v1467, %v1494
        %vm1500 = vcmask 64512
        %v1501 = vsel %vm1500, %v1474, 0.0
        %1502 = vadd.xlane.f32.xlu0 %v1501
        %v1503 = vpop.xlane.xlu0 %1502
        %v1504 = vsel %vm1500, %v1481, 0.0
        %1505 = vadd.xlane.f32.xlu0 %v1504
        %v1506 = vpop.xlane.xlu0 %1505
        %v1507 = vsel %vm1500, %v1488, 0.0
        %1508 = vadd.xlane.f32.xlu0 %v1507
        %v1509 = vpop.xlane.xlu0 %1508
        %v1510 = vsel %vm1500, %v1495, 0.0
        %1511 = vadd.xlane.f32.xlu0 %v1510
        %v1512 = vpop.xlane.xlu0 %1511
        %v1513 = vld [vmem:[%s6] sm:$0x1]
        %v1515 = vlaneseq
        %v1516 = vshrl.u32 %v1515, 7
        %v1517 = vsub.s32 0, %v1516
        %v1518 = vrot.slane %v1513, %v1517
        %1520 = vbcast.lane.b32.xlu0 %v1518, 256
        %v1521 = vpop.permute.xlu0 %1520
        %s1523 = sor.u32 256, 8
        %1524 = vbcast.lane.b32.xlu0 %v1518, %s1523
        %v1525 = vpop.permute.xlu0 %1524
        %s1527 = sor.u32 256, 16
        %1528 = vbcast.lane.b32.xlu0 %v1518, %s1527
        %v1529 = vpop.permute.xlu0 %1528
        %s1531 = sor.u32 256, 24
        %1532 = vbcast.lane.b32.xlu0 %v1518, %s1531
        %v1533 = vpop.permute.xlu0 %1532
        %v1538 = vadd.f32 %v1503, %v1521
        %v1539 = vadd.f32 %v1506, %v1525
        %v1540 = vadd.f32 %v1509, %v1529
        %v1541 = vadd.f32 %v1512, %v1533
        %v1542 = vxor.u32 %v1538, 2147483648
        %v1543 = vxor.u32 %v1539, 2147483648
        %v1544 = vxor.u32 %v1540, 2147483648
        %v1545 = vxor.u32 %v1541, 2147483648
        %v1546 = vmul.f32 %v1542, 1.442695
        %v1547 = vpow.pop %v1546
        %v1548 = vmul.f32 %v1543, 1.442695
        %v1549 = vpow.pop %v1548
        %v1550 = vmul.f32 %v1544, 1.442695
        %v1551 = vpow.pop %v1550
        %v1552 = vmul.f32 %v1545, 1.442695
        %v1553 = vpow.pop %v1552
        %v1554 = vadd.f32 %v1547, 1.0
        %v1555 = vadd.f32 %v1549, 1.0
        %v1556 = vadd.f32 %v1551, 1.0
        %v1557 = vadd.f32 %v1553, 1.0
        %v1558 = vrcp.pop %v1554
        %v1559 = vmul.f32 1.0, %v1558
        %v1560 = vrcp.pop %v1555
        %v1561 = vmul.f32 1.0, %v1560
        %v1562 = vrcp.pop %v1556
        %v1563 = vmul.f32 1.0, %v1562
        %v1564 = vrcp.pop %v1557
        %v1565 = vmul.f32 1.0, %v1564
        %v1570 = vcombine.high %v1559, %v1559
        %v1572 = vunpack.c.l.s4 1966171168
        %v1573 = vunpack.c.0.s8 %v1572
        %v1574 = vlaneseq
        %v1575 = vshrl.u32 %v1574, 7
        %v1576 = vsub.s32 %v1573, %v1575
        %v1577 = vrot.slane %v1559, %v1576
        %v1579 = vunpack.c.l.s4 1966171168
        %v1580 = vunpack.c.0.s8 %v1579
        %v1581 = vlaneseq
        %v1582 = vshrl.u32 %v1581, 7
        %v1583 = vsub.s32 %v1580, %v1582
        %v1584 = vrot.slane %v1570, %v1583
        %v1585 = vcombine.high %v1577, %v1577
        %v1586 = vcombine.high %v1584, %v1584
        %v1588 = vunpack.c.l.s4 1966171168
        %v1589 = vunpack.c.0.s8 %v1588
        %v1590 = vlaneseq
        %v1591 = vshrl.u32 %v1590, 7
        %v1592 = vsub.s32 %v1589, %v1591
        %v1593 = vrot.slane %v1577, %v1592
        %v1595 = vunpack.c.l.s4 1966171168
        %v1596 = vunpack.c.0.s8 %v1595
        %v1597 = vlaneseq
        %v1598 = vshrl.u32 %v1597, 7
        %v1599 = vsub.s32 %v1596, %v1598
        %v1600 = vrot.slane %v1584, %v1599
        %v1602 = vunpack.c.l.s4 1966171168
        %v1603 = vunpack.c.0.s8 %v1602
        %v1604 = vlaneseq
        %v1605 = vshrl.u32 %v1604, 7
        %v1606 = vsub.s32 %v1603, %v1605
        %v1607 = vrot.slane %v1585, %v1606
        %v1609 = vunpack.c.l.s4 1966171168
        %v1610 = vunpack.c.0.s8 %v1609
        %v1611 = vlaneseq
        %v1612 = vshrl.u32 %v1611, 7
        %v1613 = vsub.s32 %v1610, %v1612
        %v1614 = vrot.slane %v1586, %v1613
        %v1615 = vcombine.high %v1593, %v1593
        %v1616 = vcombine.high %v1600, %v1600
        %v1617 = vcombine.high %v1607, %v1607
        %v1618 = vcombine.high %v1614, %v1614
        %v1619 = vcombine.high %v1561, %v1561
        %v1621 = vunpack.c.l.s4 1966171168
        %v1622 = vunpack.c.0.s8 %v1621
        %v1623 = vlaneseq
        %v1624 = vshrl.u32 %v1623, 7
        %v1625 = vsub.s32 %v1622, %v1624
        %v1626 = vrot.slane %v1561, %v1625
        %v1628 = vunpack.c.l.s4 1966171168
        %v1629 = vunpack.c.0.s8 %v1628
        %v1630 = vlaneseq
        %v1631 = vshrl.u32 %v1630, 7
        %v1632 = vsub.s32 %v1629, %v1631
        %v1633 = vrot.slane %v1619, %v1632
        %v1634 = vcombine.high %v1626, %v1626
        %v1635 = vcombine.high %v1633, %v1633
        %v1637 = vunpack.c.l.s4 1966171168
        %v1638 = vunpack.c.0.s8 %v1637
        %v1639 = vlaneseq
        %v1640 = vshrl.u32 %v1639, 7
        %v1641 = vsub.s32 %v1638, %v1640
        %v1642 = vrot.slane %v1626, %v1641
        %v1644 = vunpack.c.l.s4 1966171168
        %v1645 = vunpack.c.0.s8 %v1644
        %v1646 = vlaneseq
        %v1647 = vshrl.u32 %v1646, 7
        %v1648 = vsub.s32 %v1645, %v1647
        %v1649 = vrot.slane %v1633, %v1648
        %v1651 = vunpack.c.l.s4 1966171168
        %v1652 = vunpack.c.0.s8 %v1651
        %v1653 = vlaneseq
        %v1654 = vshrl.u32 %v1653, 7
        %v1655 = vsub.s32 %v1652, %v1654
        %v1656 = vrot.slane %v1634, %v1655
        %v1658 = vunpack.c.l.s4 1966171168
        %v1659 = vunpack.c.0.s8 %v1658
        %v1660 = vlaneseq
        %v1661 = vshrl.u32 %v1660, 7
        %v1662 = vsub.s32 %v1659, %v1661
        %v1663 = vrot.slane %v1635, %v1662
        %v1664 = vcombine.high %v1642, %v1642
        %v1665 = vcombine.high %v1649, %v1649
        %v1666 = vcombine.high %v1656, %v1656
        %v1667 = vcombine.high %v1663, %v1663
        %v1668 = vcombine.high %v1563, %v1563
        %v1670 = vunpack.c.l.s4 1966171168
        %v1671 = vunpack.c.0.s8 %v1670
        %v1672 = vlaneseq
        %v1673 = vshrl.u32 %v1672, 7
        %v1674 = vsub.s32 %v1671, %v1673
        %v1675 = vrot.slane %v1563, %v1674
        %v1677 = vunpack.c.l.s4 1966171168
        %v1678 = vunpack.c.0.s8 %v1677
        %v1679 = vlaneseq
        %v1680 = vshrl.u32 %v1679, 7
        %v1681 = vsub.s32 %v1678, %v1680
        %v1682 = vrot.slane %v1668, %v1681
        %v1683 = vcombine.high %v1675, %v1675
        %v1684 = vcombine.high %v1682, %v1682
        %v1686 = vunpack.c.l.s4 1966171168
        %v1687 = vunpack.c.0.s8 %v1686
        %v1688 = vlaneseq
        %v1689 = vshrl.u32 %v1688, 7
        %v1690 = vsub.s32 %v1687, %v1689
        %v1691 = vrot.slane %v1675, %v1690
        %v1693 = vunpack.c.l.s4 1966171168
        %v1694 = vunpack.c.0.s8 %v1693
        %v1695 = vlaneseq
        %v1696 = vshrl.u32 %v1695, 7
        %v1697 = vsub.s32 %v1694, %v1696
        %v1698 = vrot.slane %v1682, %v1697
        %v1700 = vunpack.c.l.s4 1966171168
        %v1701 = vunpack.c.0.s8 %v1700
        %v1702 = vlaneseq
        %v1703 = vshrl.u32 %v1702, 7
        %v1704 = vsub.s32 %v1701, %v1703
        %v1705 = vrot.slane %v1683, %v1704
        %v1707 = vunpack.c.l.s4 1966171168
        %v1708 = vunpack.c.0.s8 %v1707
        %v1709 = vlaneseq
        %v1710 = vshrl.u32 %v1709, 7
        %v1711 = vsub.s32 %v1708, %v1710
        %v1712 = vrot.slane %v1684, %v1711
        %v1713 = vcombine.high %v1691, %v1691
        %v1714 = vcombine.high %v1698, %v1698
        %v1715 = vcombine.high %v1705, %v1705
        %v1716 = vcombine.high %v1712, %v1712
        %v1717 = vcombine.high %v1565, %v1565
        %v1719 = vunpack.c.l.s4 1966171168
        %v1720 = vunpack.c.0.s8 %v1719
        %v1721 = vlaneseq
        %v1722 = vshrl.u32 %v1721, 7
        %v1723 = vsub.s32 %v1720, %v1722
        %v1724 = vrot.slane %v1565, %v1723
        %v1726 = vunpack.c.l.s4 1966171168
        %v1727 = vunpack.c.0.s8 %v1726
        %v1728 = vlaneseq
        %v1729 = vshrl.u32 %v1728, 7
        %v1730 = vsub.s32 %v1727, %v1729
        %v1731 = vrot.slane %v1717, %v1730
        %v1732 = vcombine.high %v1724, %v1724
        %v1733 = vcombine.high %v1731, %v1731
        %v1735 = vunpack.c.l.s4 1966171168
        %v1736 = vunpack.c.0.s8 %v1735
        %v1737 = vlaneseq
        %v1738 = vshrl.u32 %v1737, 7
        %v1739 = vsub.s32 %v1736, %v1738
        %v1740 = vrot.slane %v1724, %v1739
        %v1742 = vunpack.c.l.s4 1966171168
        %v1743 = vunpack.c.0.s8 %v1742
        %v1744 = vlaneseq
        %v1745 = vshrl.u32 %v1744, 7
        %v1746 = vsub.s32 %v1743, %v1745
        %v1747 = vrot.slane %v1731, %v1746
        %v1749 = vunpack.c.l.s4 1966171168
        %v1750 = vunpack.c.0.s8 %v1749
        %v1751 = vlaneseq
        %v1752 = vshrl.u32 %v1751, 7
        %v1753 = vsub.s32 %v1750, %v1752
        %v1754 = vrot.slane %v1732, %v1753
        %v1756 = vunpack.c.l.s4 1966171168
        %v1757 = vunpack.c.0.s8 %v1756
        %v1758 = vlaneseq
        %v1759 = vshrl.u32 %v1758, 7
        %v1760 = vsub.s32 %v1757, %v1759
        %v1761 = vrot.slane %v1733, %v1760
        %v1762 = vcombine.high %v1740, %v1740
        %v1763 = vcombine.high %v1747, %v1747
        %v1764 = vcombine.high %v1754, %v1754
        %v1765 = vcombine.high %v1761, %v1761
        %v1766 = vcombine.low %v1593, %v1607
        %v1767 = vcombine.low %v1615, %v1617
        %v1768 = vcombine.low %v1600, %v1614
        %v1769 = vcombine.low %v1616, %v1618
        %v1771 = vunpack.c.l.s4 1966171168
        %v1772 = vunpack.c.0.s8 %v1771
        %v1773 = vlaneseq
        %v1774 = vshrl.u32 %v1773, 7
        %v1775 = vsub.s32 %v1772, %v1774
        %v1776 = vrot.slane %v1766, %v1775
        %v1778 = vunpack.c.l.s4 1966171168
        %v1779 = vunpack.c.0.s8 %v1778
        %v1780 = vlaneseq
        %v1781 = vshrl.u32 %v1780, 7
        %v1782 = vsub.s32 %v1779, %v1781
        %v1783 = vrot.slane %v1767, %v1782
        %v1785 = vunpack.c.l.s4 1966171168
        %v1786 = vunpack.c.0.s8 %v1785
        %v1787 = vlaneseq
        %v1788 = vshrl.u32 %v1787, 7
        %v1789 = vsub.s32 %v1786, %v1788
        %v1790 = vrot.slane %v1768, %v1789
        %v1792 = vunpack.c.l.s4 1966171168
        %v1793 = vunpack.c.0.s8 %v1792
        %v1794 = vlaneseq
        %v1795 = vshrl.u32 %v1794, 7
        %v1796 = vsub.s32 %v1793, %v1795
        %v1797 = vrot.slane %v1769, %v1796
        %v1798 = vcombine.low %v1776, %v1783
        %v1799 = vcombine.low %v1790, %v1797
        %v1801 = vunpack.c.l.s4 1966171168
        %v1802 = vunpack.c.0.s8 %v1801
        %v1803 = vlaneseq
        %v1804 = vshrl.u32 %v1803, 7
        %v1805 = vsub.s32 %v1802, %v1804
        %v1806 = vrot.slane %v1798, %v1805
        %v1808 = vunpack.c.l.s4 1966171168
        %v1809 = vunpack.c.0.s8 %v1808
        %v1810 = vlaneseq
        %v1811 = vshrl.u32 %v1810, 7
        %v1812 = vsub.s32 %v1809, %v1811
        %v1813 = vrot.slane %v1799, %v1812
        %v1814 = vcombine.low %v1806, %v1813
        %v1815 = vcombine.low %v1642, %v1656
        %v1816 = vcombine.low %v1664, %v1666
        %v1817 = vcombine.low %v1649, %v1663
        %v1818 = vcombine.low %v1665, %v1667
        %v1820 = vunpack.c.l.s4 1966171168
        %v1821 = vunpack.c.0.s8 %v1820
        %v1822 = vlaneseq
        %v1823 = vshrl.u32 %v1822, 7
        %v1824 = vsub.s32 %v1821, %v1823
        %v1825 = vrot.slane %v1815, %v1824
        %v1827 = vunpack.c.l.s4 1966171168
        %v1828 = vunpack.c.0.s8 %v1827
        %v1829 = vlaneseq
        %v1830 = vshrl.u32 %v1829, 7
        %v1831 = vsub.s32 %v1828, %v1830
        %v1832 = vrot.slane %v1816, %v1831
        %v1834 = vunpack.c.l.s4 1966171168
        %v1835 = vunpack.c.0.s8 %v1834
        %v1836 = vlaneseq
        %v1837 = vshrl.u32 %v1836, 7
        %v1838 = vsub.s32 %v1835, %v1837
        %v1839 = vrot.slane %v1817, %v1838
        %v1841 = vunpack.c.l.s4 1966171168
        %v1842 = vunpack.c.0.s8 %v1841
        %v1843 = vlaneseq
        %v1844 = vshrl.u32 %v1843, 7
        %v1845 = vsub.s32 %v1842, %v1844
        %v1846 = vrot.slane %v1818, %v1845
        %v1847 = vcombine.low %v1825, %v1832
        %v1848 = vcombine.low %v1839, %v1846
        %v1850 = vunpack.c.l.s4 1966171168
        %v1851 = vunpack.c.0.s8 %v1850
        %v1852 = vlaneseq
        %v1853 = vshrl.u32 %v1852, 7
        %v1854 = vsub.s32 %v1851, %v1853
        %v1855 = vrot.slane %v1847, %v1854
        %v1857 = vunpack.c.l.s4 1966171168
        %v1858 = vunpack.c.0.s8 %v1857
        %v1859 = vlaneseq
        %v1860 = vshrl.u32 %v1859, 7
        %v1861 = vsub.s32 %v1858, %v1860
        %v1862 = vrot.slane %v1848, %v1861
        %v1863 = vcombine.low %v1855, %v1862
        %v1864 = vcombine.low %v1691, %v1705
        %v1865 = vcombine.low %v1713, %v1715
        %v1866 = vcombine.low %v1698, %v1712
        %v1867 = vcombine.low %v1714, %v1716
        %v1869 = vunpack.c.l.s4 1966171168
        %v1870 = vunpack.c.0.s8 %v1869
        %v1871 = vlaneseq
        %v1872 = vshrl.u32 %v1871, 7
        %v1873 = vsub.s32 %v1870, %v1872
        %v1874 = vrot.slane %v1864, %v1873
        %v1876 = vunpack.c.l.s4 1966171168
        %v1877 = vunpack.c.0.s8 %v1876
        %v1878 = vlaneseq
        %v1879 = vshrl.u32 %v1878, 7
        %v1880 = vsub.s32 %v1877, %v1879
        %v1881 = vrot.slane %v1865, %v1880
        %v1883 = vunpack.c.l.s4 1966171168
        %v1884 = vunpack.c.0.s8 %v1883
        %v1885 = vlaneseq
        %v1886 = vshrl.u32 %v1885, 7
        %v1887 = vsub.s32 %v1884, %v1886
        %v1888 = vrot.slane %v1866, %v1887
        %v1890 = vunpack.c.l.s4 1966171168
        %v1891 = vunpack.c.0.s8 %v1890
        %v1892 = vlaneseq
        %v1893 = vshrl.u32 %v1892, 7
        %v1894 = vsub.s32 %v1891, %v1893
        %v1895 = vrot.slane %v1867, %v1894
        %v1896 = vcombine.low %v1874, %v1881
        %v1897 = vcombine.low %v1888, %v1895
        %v1899 = vunpack.c.l.s4 1966171168
        %v1900 = vunpack.c.0.s8 %v1899
        %v1901 = vlaneseq
        %v1902 = vshrl.u32 %v1901, 7
        %v1903 = vsub.s32 %v1900, %v1902
        %v1904 = vrot.slane %v1896, %v1903
        %v1906 = vunpack.c.l.s4 1966171168
        %v1907 = vunpack.c.0.s8 %v1906
        %v1908 = vlaneseq
        %v1909 = vshrl.u32 %v1908, 7
        %v1910 = vsub.s32 %v1907, %v1909
        %v1911 = vrot.slane %v1897, %v1910
        %v1912 = vcombine.low %v1904, %v1911
        %v1913 = vcombine.low %v1740, %v1754
        %v1914 = vcombine.low %v1762, %v1764
        %v1915 = vcombine.low %v1747, %v1761
        %v1916 = vcombine.low %v1763, %v1765
        %v1918 = vunpack.c.l.s4 1966171168
        %v1919 = vunpack.c.0.s8 %v1918
        %v1920 = vlaneseq
        %v1921 = vshrl.u32 %v1920, 7
        %v1922 = vsub.s32 %v1919, %v1921
        %v1923 = vrot.slane %v1913, %v1922
        %v1925 = vunpack.c.l.s4 1966171168
        %v1926 = vunpack.c.0.s8 %v1925
        %v1927 = vlaneseq
        %v1928 = vshrl.u32 %v1927, 7
        %v1929 = vsub.s32 %v1926, %v1928
        %v1930 = vrot.slane %v1914, %v1929
        %v1932 = vunpack.c.l.s4 1966171168
        %v1933 = vunpack.c.0.s8 %v1932
        %v1934 = vlaneseq
        %v1935 = vshrl.u32 %v1934, 7
        %v1936 = vsub.s32 %v1933, %v1935
        %v1937 = vrot.slane %v1915, %v1936
        %v1939 = vunpack.c.l.s4 1966171168
        %v1940 = vunpack.c.0.s8 %v1939
        %v1941 = vlaneseq
        %v1942 = vshrl.u32 %v1941, 7
        %v1943 = vsub.s32 %v1940, %v1942
        %v1944 = vrot.slane %v1916, %v1943
        %v1945 = vcombine.low %v1923, %v1930
        %v1946 = vcombine.low %v1937, %v1944
        %v1948 = vunpack.c.l.s4 1966171168
        %v1949 = vunpack.c.0.s8 %v1948
        %v1950 = vlaneseq
        %v1951 = vshrl.u32 %v1950, 7
        %v1952 = vsub.s32 %v1949, %v1951
        %v1953 = vrot.slane %v1945, %v1952
        %v1955 = vunpack.c.l.s4 1966171168
        %v1956 = vunpack.c.0.s8 %v1955
        %v1957 = vlaneseq
        %v1958 = vshrl.u32 %v1957, 7
        %v1959 = vsub.s32 %v1956, %v1958
        %v1960 = vrot.slane %v1946, %v1959
        %v1961 = vcombine.low %v1953, %v1960
        %1962 = vset.pattern.permute.xlu0 0
        %1963 = vperm.xlu0 %1962, %v1814
        %v1964 = vpop.permute.xlu0 %1963
        %1965 = vset.pattern.permute.xlu0 0
        %1966 = vperm.xlu0 %1965, %v1863
        %v1967 = vpop.permute.xlu0 %1966
        %1968 = vset.pattern.permute.xlu0 0
        %1969 = vperm.xlu0 %1968, %v1912
        %v1970 = vpop.permute.xlu0 %1969
        %1971 = vset.pattern.permute.xlu0 0
        %1972 = vperm.xlu0 %1971, %v1961
        %v1973 = vpop.permute.xlu0 %1972
        %v1974 = vlaneseq
        %v1975 = vshrl.u32 %v1974, 7
        %v1976 = vsub.s32 %v726, %v1975
        %v1977 = vrot.slane %v1964, %v1976
        %v1978 = vlaneseq
        %v1979 = vshrl.u32 %v1978, 7
        %v1980 = vsub.s32 %v731, %v1979
        %v1981 = vrot.slane %v1967, %v1980
        %v1982 = vsel %vm736, %v1981, %v1977
        %v1983 = vlaneseq
        %v1984 = vshrl.u32 %v1983, 7
        %v1985 = vsub.s32 %v738, %v1984
        %v1986 = vrot.slane %v1970, %v1985
        %v1987 = vsel %vm743, %v1986, %v1982
        %v1988 = vlaneseq
        %v1989 = vshrl.u32 %v1988, 7
        %v1990 = vsub.s32 %v745, %v1989
        %v1991 = vrot.slane %v1973, %v1990
        %v1992 = vsel %vm750, %v1991, %v1987
        %v1994 = vunpack.c.l.s4 1966171168
        %v1995 = vunpack.c.0.s8 %v1994
        %v1996 = vlaneseq
        %v1997 = vshrl.u32 %v1996, 7
        %v1998 = vsub.s32 %v1995, %v1997
        %v1999 = vrot.slane %v1992, %v1998
        %v2001 = vunpack.c.l.s4 1966171168
        %v2002 = vunpack.c.0.s8 %v2001
        %v2003 = vlaneseq
        %v2004 = vshrl.u32 %v2003, 7
        %v2005 = vsub.s32 %v2002, %v2004
        %v2006 = vrot.slane %v1999, %v2005
        %v2008 = vmul.f32 %v321, %v2006
        %v2009 = vadd.f32 %v2008, 1.0
        %2010 = vset.pattern.permute.xlu0 0
        %2011 = vperm.xlu0 %2010, %v1814
        %v2012 = vpop.permute.xlu0 %2011
        %2013 = vset.pattern.permute.xlu0 0
        %2014 = vperm.xlu0 %2013, %v1863
        %v2015 = vpop.permute.xlu0 %2014
        %2016 = vset.pattern.permute.xlu0 0
        %2017 = vperm.xlu0 %2016, %v1912
        %v2018 = vpop.permute.xlu0 %2017
        %2019 = vset.pattern.permute.xlu0 0
        %2020 = vperm.xlu0 %2019, %v1961
        %v2021 = vpop.permute.xlu0 %2020
        %v2022 = vlaneseq
        %v2023 = vshrl.u32 %v2022, 7
        %v2024 = vsub.s32 %v726, %v2023
        %v2025 = vrot.slane %v2012, %v2024
        %v2026 = vlaneseq
        %v2027 = vshrl.u32 %v2026, 7
        %v2028 = vsub.s32 %v731, %v2027
        %v2029 = vrot.slane %v2015, %v2028
        %v2030 = vsel %vm736, %v2029, %v2025
        %v2031 = vlaneseq
        %v2032 = vshrl.u32 %v2031, 7
        %v2033 = vsub.s32 %v738, %v2032
        %v2034 = vrot.slane %v2018, %v2033
        %v2035 = vsel %vm743, %v2034, %v2030
        %v2036 = vlaneseq
        %v2037 = vshrl.u32 %v2036, 7
        %v2038 = vsub.s32 %v745, %v2037
        %v2039 = vrot.slane %v2021, %v2038
        %v2040 = vsel %vm750, %v2039, %v2035
        %v2042 = vunpack.c.l.s4 1966171168
        %v2043 = vunpack.c.0.s8 %v2042
        %v2044 = vlaneseq
        %v2045 = vshrl.u32 %v2044, 7
        %v2046 = vsub.s32 %v2043, %v2045
        %v2047 = vrot.slane %v2040, %v2046
        %v2049 = vunpack.c.l.s4 1966171168
        %v2050 = vunpack.c.0.s8 %v2049
        %v2051 = vlaneseq
        %v2052 = vshrl.u32 %v2051, 7
        %v2053 = vsub.s32 %v2050, %v2052
        %v2054 = vrot.slane %v2047, %v2053
        %v2056 = vmul.f32 %v350, %v2054
        %v2057 = vlaneseq
        %v2058 = vshrl.u32 %v2057, 7
        %v2059 = vsub.s32 0, %v2058
        %v2060 = vrot.slane %v2009, %v2059
        %2062 = vbcast.lane.b32.xlu0 %v2060, 256
        %v2063 = vpop.permute.xlu0 %2062
        %s2065 = sor.u32 256, 8
        %2066 = vbcast.lane.b32.xlu0 %v2060, %s2065
        %v2067 = vpop.permute.xlu0 %2066
        %s2069 = sor.u32 256, 16
        %2070 = vbcast.lane.b32.xlu0 %v2060, %s2069
        %v2071 = vpop.permute.xlu0 %2070
        %s2073 = sor.u32 256, 24
        %2074 = vbcast.lane.b32.xlu0 %v2060, %s2073
        %v2075 = vpop.permute.xlu0 %2074
        %v2076 = vmul.f32 %v297, %v2063
        %v2077 = vmul.f32 %v298, %v2063
        %v2078 = vmul.f32 %v299, %v2067
        %v2079 = vmul.f32 %v300, %v2067
        %v2080 = vmul.f32 %v301, %v2071
        %v2081 = vmul.f32 %v302, %v2071
        %v2082 = vmul.f32 %v303, %v2075
        %v2083 = vmul.f32 %v304, %v2075
        %v2084 = vlaneseq
        %v2085 = vshrl.u32 %v2084, 7
        %v2086 = vsub.s32 0, %v2085
        %v2087 = vrot.slane %v2056, %v2086
        %2089 = vbcast.lane.b32.xlu0 %v2087, 256
        %v2090 = vpop.permute.xlu0 %2089
        %s2092 = sor.u32 256, 8
        %2093 = vbcast.lane.b32.xlu0 %v2087, %s2092
        %v2094 = vpop.permute.xlu0 %2093
        %s2096 = sor.u32 256, 16
        %2097 = vbcast.lane.b32.xlu0 %v2087, %s2096
        %v2098 = vpop.permute.xlu0 %2097
        %s2100 = sor.u32 256, 24
        %2101 = vbcast.lane.b32.xlu0 %v2087, %s2100
        %v2102 = vpop.permute.xlu0 %2101
        %v2103 = vadd.f32 %v2076, %v2090
        %v2104 = vadd.f32 %v2077, %v2090
        %v2105 = vadd.f32 %v2078, %v2094
        %v2106 = vadd.f32 %v2079, %v2094
        %v2107 = vadd.f32 %v2080, %v2098
        %v2108 = vadd.f32 %v2081, %v2098
        %v2109 = vadd.f32 %v2082, %v2102
        %v2110 = vadd.f32 %v2083, %v2102
        %2111 = vst [vmem:[%s296] sm:$0xff] %v2103
        %2112 = vst [vmem:[%s296 + $0x8] sm:$0xff] %v2104
        %2113 = vst [vmem:[%s296 + $0x10] sm:$0xff] %v2105
        %2114 = vst [vmem:[%s296 + $0x18] sm:$0xff] %v2106
        %2115 = vst [vmem:[%s296 + $0x20] sm:$0xff] %v2107
        %2116 = vst [vmem:[%s296 + $0x28] sm:$0xff] %v2108
        %2117 = vst [vmem:[%s296 + $0x30] sm:$0xff] %v2109
        %2118 = vst [vmem:[%s296 + $0x38] sm:$0xff] %v2110
        %s2119 = sand.u32 %s184, 1
        %s2120 = scalar_lea.sflag [#allocation4], %s2119
        %s2121 = sand.u32 %s184, 1
        %s2122 = smul.addr %s2121, 64
        %s2123 = scalar_lea.vmem [#allocation5], %s2122
        // Predicated region
        $region53: #{tpu_custom_call.1} parent=47 // pred_check
          %p2124 = pneg %p194
        $region54: #{tpu_custom_call.1} parent=47 // pred_check_branch
          %2126 = sbr.rel (%p2124) target = $region56
        $region55: #{tpu_custom_call.1} parent=47 // pred_region
          %s2128 = ssub.s32 1024, 1024
          %2129 = vsyncadd %s2120, %s2128
          %s2130 = smul.addr %s24, 8
          %s2131 = smul.addr %s2130, 128
          %s2132 = scalar_lea.hbm %s7, %s2131
          %s2133 = sshll.u32 %s2123, 4
          %s2134 = int_to_ptr.vmem [resolvable:$true] %s2133
          %2139 = dma.vmem_to_hbm [thread:$0]  %s2134, 1024, %s2132, %s2120, 256, 256, 16
        $region56: #{tpu_custom_call.1} parent=47 // pred_fallthru
          _
      $region48: #{tpu_custom_call.1} parent=5 // pred_fallthru
        _
      %p2140 = scmp.le.s32.totalorder 2, %s19
      // Predicated region
      $region57: #{tpu_custom_call.1} parent=5 // pred_check
        %p2141 = pneg %p2140
      $region58: #{tpu_custom_call.1} parent=5 // pred_check_branch
        %2143 = sbr.rel (%p2141) target = $region60
      $region59: #{tpu_custom_call.1} parent=5 // pred_region
        %s2144 = ssub.s32 %s19, 2
        // Predicated region
        $region61: #{tpu_custom_call.1} parent=59 // pred_check
          %p2145 = pneg %p200
        $region62: #{tpu_custom_call.1} parent=59 // pred_check_branch
          %2147 = sbr.rel (%p2145) target = $region64
        $region63: #{tpu_custom_call.1} parent=59 // pred_region
          %s2148 = sand.u32 %s185, 1
          %s2149 = scalar_lea.sflag [#allocation4], %s2148
          %s2150 = sand.u32 %s185, 1
          %s2151 = smul.addr %s2150, 64
          %s2152 = scalar_lea.vmem [#allocation5], %s2151
          %2153 = dma.done %s2149, 1024
        $region64: #{tpu_custom_call.1} parent=59 // pred_fallthru
          _
      $region60: #{tpu_custom_call.1} parent=5 // pred_fallthru
        _
    $region6: #{tpu_custom_call.1} parent=1 // loop_footer
      %s23 = sadd.s32 1, %s19
    $region7: #{tpu_custom_call.1} parent=1 // loop_footer_branch
      %18 = sbr.rel target = $region3
    $region8: #{tpu_custom_call.1} parent=1 // loop_exit
      _
    %2154 = vsyncpa [#allocation3], 1
    %s2155 = scalar_lea.sflag [#allocation3], 1
    %2156 = vsyncpa %s2155, 1
    %2157 = vsyncpa [#allocation4], 1
    %s2158 = scalar_lea.sflag [#allocation4], 1
    %2159 = vsyncpa %s2158, 1

</llo_original>
